<compile_context>
chip_gen: v7x
topology: tpu7x:2x2x1
jax: 0.10.0
libtpu: 0.0.40
codegen_flags: <defaults>
</compile_context>

<pallas_src>
import functools
import math

import jax
import jax.numpy as jnp
from jax.experimental import pallas as pl
from jax.experimental.pallas import tpu as pltpu


# ----------------------------------------------------------------------------
# in-kernel helpers
# ----------------------------------------------------------------------------
def _norm_apply(x, alpha, bias, eps=1e-6):
    """Matches torch: alpha*(x - mean)/(std_unbiased + eps) + bias (last axis)."""
    d = x.shape[-1]
    mean = jnp.mean(x, axis=-1, keepdims=True)
    xc = x - mean
    var = jnp.sum(xc * xc, axis=-1, keepdims=True) * jnp.float32(1.0 / (d - 1))
    # exact reciprocal for the norms (approx would compound across layers)
    inv = pl.reciprocal(jnp.sqrt(var) + jnp.float32(eps), approx=False)
    return alpha * xc * inv + bias


def _mm(a, b, compute_dtype):
    """MXU matmul: operands cast to compute_dtype (bf16), f32 accumulation."""
    return jnp.dot(a.astype(compute_dtype), b.astype(compute_dtype),
                   preferred_element_type=jnp.float32)


# ----------------------------------------------------------------------------
# fused encoder kernel: grid = (batch_tile index, layer index)
# ----------------------------------------------------------------------------
def encoder_kernel(x_ref, pe_ref,
                   a1_ref, b1_ref, wqkv_ref, bqkv_ref, wo_ref, bo_ref,
                   a2_ref, b2_ref, w1_ref, bf1_ref, w2_ref, bf2_ref,
                   fa_ref, fb_ref,
                   o_ref,
                   ctx_ref,
                   *, heads, seq, d_model, d_ff, ff_chunk, compute_dtype):
    layer = pl.program_id(1)
    n_layers = pl.num_programs(1)
    bt = o_ref.shape[0]                           # batch-tile size (static)
    m = bt * seq
    dk = d_model // heads
    inv_sqrt_dk = jnp.float32(1.0 / math.sqrt(dk))

    # ---- layer-0 prologue: positional encoding x*sqrt(D) + pe (broadcast over batch tile)
    @pl.when(layer == 0)
    def _():
        o_ref[...] = (x_ref[...] * jnp.float32(math.sqrt(d_model))
                      + pe_ref[...][None, :, :])

    # residual stream: resident in the output block across the layer axis
    x = o_ref[...].reshape(m, d_model)            # (M, D) f32

    # ---- sublayer 1: pre-norm + multi-head self-attention + residual ----
    x2 = _norm_apply(x, a1_ref[0], b1_ref[0])
    qkv = _mm(x2, wqkv_ref[0], compute_dtype) + bqkv_ref[0]      # fused QKV: (M, 3D) f32

    for h in range(heads):                        # heads is small; static unroll
        sl = slice(h * dk, (h + 1) * dk)
        qh = qkv[:, sl].reshape(bt, seq, dk).astype(compute_dtype)
        kh = qkv[:, d_model + h * dk:d_model + (h + 1) * dk] \
            .reshape(bt, seq, dk).astype(compute_dtype)
        vh = qkv[:, 2 * d_model + h * dk:2 * d_model + (h + 1) * dk] \
            .reshape(bt, seq, dk).astype(compute_dtype)
        s = jnp.einsum('bqd,bkd->bqk', qh, kh,
                       preferred_element_type=jnp.float32) * inv_sqrt_dk
        s = s - jnp.max(s, axis=-1, keepdims=True)
        p = jnp.exp(s)
        p = p * pl.reciprocal(jnp.sum(p, axis=-1, keepdims=True), approx=True)
        ctx_h = jnp.einsum('bqk,bkd->bqd', p.astype(compute_dtype), vh,
                           preferred_element_type=jnp.float32)
        # head-concat via static column writes (no concatenate, no K=dk matmuls)
        ctx_ref[:, sl] = ctx_h.reshape(m, dk)

    # ONE (M, D) @ (D, D) output projection — contraction K = d_model fills the MXU
    x = x + _mm(ctx_ref[...], wo_ref[0], compute_dtype) + bo_ref[0]   # dropout_1 = id (eval)

    # ---- sublayer 2: pre-norm + feed-forward + residual (chunked over d_ff) ----
    x2 = _norm_apply(x, a2_ref[0], b2_ref[0])
    ff = jnp.zeros_like(x)
    for c0 in range(0, d_ff, ff_chunk):
        c1 = min(d_ff, c0 + ff_chunk)
        hdd = jnp.maximum(_mm(x2, w1_ref[0, :, c0:c1], compute_dtype)
                          + bf1_ref[0, :, c0:c1], 0.0)
        ff = ff + _mm(hdd, w2_ref[0, c0:c1, :], compute_dtype)
    x = x + ff + bf2_ref[0]                       # dropout_2 = identity (eval)

    o_ref[...] = x.reshape(bt, seq, d_model)      # residual stays in VMEM (resident block)

    # ---- last-layer epilogue: final Norm (overwrites the resident block once) ----
    @pl.when(layer == n_layers - 1)
    def _():
        o_ref[...] = _norm_apply(x, fa_ref[...], fb_ref[...]).reshape(bt, seq, d_model)


# ----------------------------------------------------------------------------
# wrapper: one pallas_call for the whole encoder
# ----------------------------------------------------------------------------
def encoder_forward(x, params, heads, compute_dtype=jnp.bfloat16,
                    batch_tile=None, ff_chunk=512):
    B, S, D = x.shape
    L = params["wqkv"].shape[0]
    d_ff = params["w1"].shape[-1]
    assert D % heads == 0

    if batch_tile is None:
        # >=2 batch tiles when possible so the "parallel" axis can feed both
        # TensorCores on v7x; batch tiles are independent (attention is per-sample).
        batch_tile = B if B % 2 else B // 2
    assert B % batch_tile == 0
    n_bt = B // batch_tile

    # bf16 for MXU operands only; biases / norm params stay f32.
    matmul_keys = ("wqkv", "wo", "w1", "w2")
    layer_keys = ("alpha1", "bias1", "wqkv", "bqkv", "wo", "bo",
                  "alpha2", "bias2", "w1", "bf1", "w2", "bf2")
    layer_weights = [params[k].astype(compute_dtype) if k in matmul_keys else params[k]
                     for k in layer_keys]

    pe = params["pe"][:S]                          # (S, D), read once, broadcast in-kernel

    def resident(shape):
        nd = len(shape)
        return pl.BlockSpec(shape, lambda b, l, nd=nd: (0,) * nd)

    def per_layer(arr):
        nd = arr.ndim
        return pl.BlockSpec((1,) + arr.shape[1:],
                            lambda b, l, nd=nd: (l,) + (0,) * (nd - 1))

    in_act_spec = pl.BlockSpec((batch_tile, S, D), lambda b, l: (b, 0, 0))
    out_act_spec = pl.BlockSpec((batch_tile, S, D), lambda b, l: (b, 0, 0))

    in_specs = ([in_act_spec, resident((S, D))]
                + [per_layer(w) for w in layer_weights]
                + [resident((1, D)), resident((1, D))])

    kernel = functools.partial(
        encoder_kernel, heads=heads, seq=S, d_model=D, d_ff=d_ff,
        ff_chunk=min(ff_chunk, d_ff), compute_dtype=compute_dtype)

    out = pl.pallas_call(
        kernel,
        out_shape=jax.ShapeDtypeStruct((B, S, D), jnp.float32),
        grid=(n_bt, L),
        in_specs=in_specs,
        out_specs=out_act_spec,
        scratch_shapes=[pltpu.VMEM((batch_tile * S, D), jnp.float32)],   # head-concat ctx
        compiler_params=pltpu.CompilerParams(
            dimension_semantics=("parallel", "arbitrary"),
            # v5e/v6e: 128 MiB physical; v7x: 64 MiB -> keep scoped limit below it.
            vmem_limit_bytes=48 * 1024 * 1024),
    )(x, pe, *layer_weights, params["norm_alpha"], params["norm_bias"])

    return out


# ----------------------------------------------------------------------------
# deterministic parameter construction (synthetic init, shapes from __init__)
# ----------------------------------------------------------------------------
def make_pe_table(max_seq_len, d_model):
    pos = jnp.arange(max_seq_len, dtype=jnp.float32)[:, None]
    idx = jnp.arange(d_model, dtype=jnp.float32)[None, :]
    angle = pos / jnp.power(10000.0, (2.0 * idx) / d_model)
    even = (jnp.arange(d_model) % 2 == 0)[None, :]
    return jnp.where(even, jnp.sin(angle), jnp.cos(angle)).astype(jnp.float32)


def init_params(key, d_model, d_ff, n_layers, max_seq_len):
    def lin(k, din, dout):
        kw, kb = jax.random.split(k)
        w = 0.02 * jax.random.normal(kw, (din, dout), jnp.float32)
        b = 0.02 * jax.random.normal(kb, (1, dout), jnp.float32)
        return w, b

    keys = jax.random.split(key, n_layers)
    per_layer = []
    for i in range(n_layers):
        ks = jax.random.split(keys[i], 6)
        wq, bq = lin(ks[0], d_model, d_model)
        wk, bk = lin(ks[1], d_model, d_model)
        wv, bv = lin(ks[2], d_model, d_model)
        wo, bo = lin(ks[3], d_model, d_model)
        w1, bf1 = lin(ks[4], d_model, d_ff)
        w2, bf2 = lin(ks[5], d_ff, d_model)
        per_layer.append(dict(
            alpha1=jnp.ones((1, d_model), jnp.float32),
            bias1=jnp.zeros((1, d_model), jnp.float32),
            wqkv=jnp.concatenate([wq, wk, wv], axis=1),    # fused (D, 3D)
            bqkv=jnp.concatenate([bq, bk, bv], axis=1),    # fused (1, 3D)
            wo=wo, bo=bo,
            alpha2=jnp.ones((1, d_model), jnp.float32),
            bias2=jnp.zeros((1, d_model), jnp.float32),
            w1=w1, bf1=bf1, w2=w2, bf2=bf2,
        ))
    stacked = {k: jnp.stack([lp[k] for lp in per_layer], axis=0)
               for k in per_layer[0]}
    stacked.update(
        pe=make_pe_table(max_seq_len, d_model),
        norm_alpha=jnp.ones((1, d_model), jnp.float32),
        norm_bias=jnp.zeros((1, d_model), jnp.float32),
    )
    return stacked


# ----------------------------------------------------------------------------
if __name__ == "__main__":
    B, S, D = 2, 8, 32          # batch, seq, d_model
    HEADS, N_LAYERS = 4, 2
    D_FF = 64                   # FeedForward hidden size (default 2048, small here)

    key = jax.random.PRNGKey(0)
    k_params, k_x = jax.random.split(key)
    params = init_params(k_params, D, D_FF, N_LAYERS, max_seq_len=S)
    x = jax.random.normal(k_x, (B, S, D), jnp.float32)

    fwd = jax.jit(lambda xx, pp: encoder_forward(xx, pp, HEADS))
    out = fwd(x, params)
    jax.block_until_ready(out)
    assert out.shape == (B, S, D) and out.dtype == jnp.float32
    print("KERNEL_OK")
</pallas_src>

<mosaic_0001>
module attributes {stable_mosaic.version = 11 : i64} {
  func.func @encoder_kernel(%arg0: i32, %arg1: i32, %arg2: memref<1x8x32xf32, #tpu.memory_space<vmem>>, %arg3: memref<8x32xf32, #tpu.memory_space<vmem>>, %arg4: memref<1x1x32xf32, #tpu.memory_space<vmem>>, %arg5: memref<1x1x32xf32, #tpu.memory_space<vmem>>, %arg6: memref<1x32x96xbf16, #tpu.memory_space<vmem>>, %arg7: memref<1x1x96xf32, #tpu.memory_space<vmem>>, %arg8: memref<1x32x32xbf16, #tpu.memory_space<vmem>>, %arg9: memref<1x1x32xf32, #tpu.memory_space<vmem>>, %arg10: memref<1x1x32xf32, #tpu.memory_space<vmem>>, %arg11: memref<1x1x32xf32, #tpu.memory_space<vmem>>, %arg12: memref<1x32x64xbf16, #tpu.memory_space<vmem>>, %arg13: memref<1x1x64xf32, #tpu.memory_space<vmem>>, %arg14: memref<1x64x32xbf16, #tpu.memory_space<vmem>>, %arg15: memref<1x1x32xf32, #tpu.memory_space<vmem>>, %arg16: memref<1x32xf32, #tpu.memory_space<vmem>>, %arg17: memref<1x32xf32, #tpu.memory_space<vmem>>, %arg18: memref<1x8x32xf32, #tpu.memory_space<vmem>>, %arg19: memref<8x32xf32, #tpu.memory_space<vmem>>) attributes {dimension_semantics = [#tpu.dimension_semantics<parallel>, #tpu.dimension_semantics<arbitrary>], iteration_bounds = array<i64: 2, 2>, scalar_prefetch = 0 : i64, scratch_operands = 1 : i64, tpu.core_type = #tpu.core_type<tc>, window_params = [{transform_indices = @transform_0, window_bounds = array<i64: 1, 8, 32>}, {pipeline_mode = #tpu.pipeline_mode<synchronous>, transform_indices = @transform_1, window_bounds = array<i64: 8, 32>}, {transform_indices = @transform_2, window_bounds = array<i64: 1, 1, 32>}, {transform_indices = @transform_3, window_bounds = array<i64: 1, 1, 32>}, {transform_indices = @transform_4, window_bounds = array<i64: 1, 32, 96>}, {transform_indices = @transform_5, window_bounds = array<i64: 1, 1, 96>}, {transform_indices = @transform_6, window_bounds = array<i64: 1, 32, 32>}, {transform_indices = @transform_7, window_bounds = array<i64: 1, 1, 32>}, {transform_indices = @transform_8, window_bounds = array<i64: 1, 1, 32>}, {transform_indices = @transform_9, window_bounds = array<i64: 1, 1, 32>}, {transform_indices = @transform_10, window_bounds = array<i64: 1, 32, 64>}, {transform_indices = @transform_11, window_bounds = array<i64: 1, 1, 64>}, {transform_indices = @transform_12, window_bounds = array<i64: 1, 64, 32>}, {transform_indices = @transform_13, window_bounds = array<i64: 1, 1, 32>}, {pipeline_mode = #tpu.pipeline_mode<synchronous>, transform_indices = @transform_14, window_bounds = array<i64: 1, 32>}, {pipeline_mode = #tpu.pipeline_mode<synchronous>, transform_indices = @transform_15, window_bounds = array<i64: 1, 32>}, {transform_indices = @transform_16, window_bounds = array<i64: 1, 8, 32>}]} {
    %c0_i32 = arith.constant 0 : i32
    %0 = arith.cmpi eq, %arg1, %c0_i32 : i32
    %1 = arith.extui %0 : i1 to i32
    %c0_i32_0 = arith.constant 0 : i32
    %2 = arith.cmpi ne, %1, %c0_i32_0 : i32
    scf.if %2 {
      %c0_85 = arith.constant 0 : index
      %c0_86 = arith.constant 0 : index
      %c0_87 = arith.constant 0 : index
      %203 = vector.load %arg2[%c0_85, %c0_86, %c0_87] : memref<1x8x32xf32, #tpu.memory_space<vmem>>, vector<1x8x32xf32>
      %cst_88 = arith.constant 5.65685415 : f32
      %204 = vector.broadcast %cst_88 : f32 to vector<1x8x32xf32>
      %205 = arith.mulf %203, %204 : vector<1x8x32xf32>
      %c0_89 = arith.constant 0 : index
      %c0_90 = arith.constant 0 : index
      %206 = vector.load %arg3[%c0_89, %c0_90] : memref<8x32xf32, #tpu.memory_space<vmem>>, vector<8x32xf32>
      %207 = vector.shape_cast %206 : vector<8x32xf32> to vector<1x8x32xf32>
      %208 = arith.addf %205, %207 : vector<1x8x32xf32>
      %c0_91 = arith.constant 0 : index
      %c0_92 = arith.constant 0 : index
      %c0_93 = arith.constant 0 : index
      %209 = vector.load %arg18[%c0_91, %c0_92, %c0_93] : memref<1x8x32xf32, #tpu.memory_space<vmem>>, vector<1x8x32xf32>
      tpu.vector_store %arg18[%c0_91, %c0_92, %c0_93], %208 {strides = array<i32>} : memref<1x8x32xf32, #tpu.memory_space<vmem>>, vector<1x8x32xf32>,
    } else {
    }
    %c0 = arith.constant 0 : index
    %c0_1 = arith.constant 0 : index
    %c0_2 = arith.constant 0 : index
    %3 = vector.load %arg18[%c0, %c0_1, %c0_2] : memref<1x8x32xf32, #tpu.memory_space<vmem>>, vector<1x8x32xf32>
    %4 = vector.shape_cast %3 : vector<1x8x32xf32> to vector<8x32xf32>
    %c0_3 = arith.constant 0 : index
    %c0_4 = arith.constant 0 : index
    %c0_5 = arith.constant 0 : index
    %5 = vector.load %arg4[%c0_3, %c0_4, %c0_5] : memref<1x1x32xf32, #tpu.memory_space<vmem>>, vector<1x1x32xf32>
    %6 = vector.shape_cast %5 : vector<1x1x32xf32> to vector<1x32xf32>
    %c0_6 = arith.constant 0 : index
    %c0_7 = arith.constant 0 : index
    %c0_8 = arith.constant 0 : index
    %7 = vector.load %arg5[%c0_6, %c0_7, %c0_8] : memref<1x1x32xf32, #tpu.memory_space<vmem>>, vector<1x1x32xf32>
    %8 = vector.shape_cast %7 : vector<1x1x32xf32> to vector<1x32xf32>
    %cst = arith.constant dense<0.000000e+00> : vector<8xf32>
    %9 = vector.multi_reduction <add>, %4, %cst [1] : vector<8x32xf32> to vector<8xf32>
    %10 = vector.shape_cast %9 : vector<8xf32> to vector<8x1xf32>
    %cst_9 = arith.constant 3.200000e+01 : f32
    %11 = vector.broadcast %cst_9 : f32 to vector<8x1xf32>
    %12 = arith.divf %10, %11 : vector<8x1xf32>
    %13 = vector.broadcast %12 : vector<8x1xf32> to vector<8x32xf32>
    %14 = arith.subf %4, %13 : vector<8x32xf32>
    %15 = arith.mulf %14, %14 : vector<8x32xf32>
    %cst_10 = arith.constant dense<0.000000e+00> : vector<8xf32>
    %16 = vector.multi_reduction <add>, %15, %cst_10 [1] : vector<8x32xf32> to vector<8xf32>
    %17 = vector.shape_cast %16 : vector<8xf32> to vector<8x1xf32>
    %cst_11 = arith.constant 0.0322580636 : f32
    %18 = vector.broadcast %cst_11 : f32 to vector<8x1xf32>
    %19 = arith.mulf %17, %18 : vector<8x1xf32>
    %20 = math.sqrt %19 : vector<8x1xf32>
    %cst_12 = arith.constant 9.99999997E-7 : f32
    %21 = vector.broadcast %cst_12 : f32 to vector<8x1xf32>
    %22 = arith.addf %20, %21 : vector<8x1xf32>
    %23 = tpu.reciprocal %22 : vector<8x1xf32> -> vector<8x1xf32>
    %24 = vector.broadcast %6 : vector<1x32xf32> to vector<8x32xf32>
    %25 = arith.mulf %24, %14 : vector<8x32xf32>
    %26 = vector.broadcast %23 : vector<8x1xf32> to vector<8x32xf32>
    %27 = arith.mulf %25, %26 : vector<8x32xf32>
    %28 = vector.broadcast %8 : vector<1x32xf32> to vector<8x32xf32>
    %29 = arith.addf %27, %28 : vector<8x32xf32>
    %c0_13 = arith.constant 0 : index
    %c0_14 = arith.constant 0 : index
    %c0_15 = arith.constant 0 : index
    %30 = vector.load %arg6[%c0_13, %c0_14, %c0_15] : memref<1x32x96xbf16, #tpu.memory_space<vmem>>, vector<1x32x96xbf16>
    %31 = vector.shape_cast %30 : vector<1x32x96xbf16> to vector<32x96xbf16>
    %32 = arith.truncf %29 : vector<8x32xf32> to vector<8x32xbf16>
    %cst_16 = arith.constant dense<0.000000e+00> : vector<8x96xf32>
    %33 = tpu.matmul %32, %31, %cst_16 {dimension_numbers = #tpu.dot_dimension_numbers<[1], [0], [0], [1], [0, 0, 1, 1], [], []>} : vector<8x32xbf16>, vector<32x96xbf16>, vector<8x96xf32> -> vector<8x96xf32>
    %c0_17 = arith.constant 0 : index
    %c0_18 = arith.constant 0 : index
    %c0_19 = arith.constant 0 : index
    %34 = vector.load %arg7[%c0_17, %c0_18, %c0_19] : memref<1x1x96xf32, #tpu.memory_space<vmem>>, vector<1x1x96xf32>
    %35 = vector.shape_cast %34 : vector<1x1x96xf32> to vector<1x96xf32>
    %36 = vector.broadcast %35 : vector<1x96xf32> to vector<8x96xf32>
    %37 = arith.addf %33, %36 : vector<8x96xf32>
    %38 = vector.extract_strided_slice %37 {offsets = [0, 0], sizes = [8, 8], strides = [1, 1]} : vector<8x96xf32> to vector<8x8xf32>
    %39 = vector.shape_cast %38 : vector<8x8xf32> to vector<1x8x8xf32>
    %40 = arith.truncf %39 : vector<1x8x8xf32> to vector<1x8x8xbf16>
    %41 = vector.extract_strided_slice %37 {offsets = [0, 32], sizes = [8, 8], strides = [1, 1]} : vector<8x96xf32> to vector<8x8xf32>
    %42 = vector.shape_cast %41 : vector<8x8xf32> to vector<1x8x8xf32>
    %43 = arith.truncf %42 : vector<1x8x8xf32> to vector<1x8x8xbf16>
    %44 = vector.extract_strided_slice %37 {offsets = [0, 64], sizes = [8, 8], strides = [1, 1]} : vector<8x96xf32> to vector<8x8xf32>
    %45 = vector.shape_cast %44 : vector<8x8xf32> to vector<1x8x8xf32>
    %46 = arith.truncf %45 : vector<1x8x8xf32> to vector<1x8x8xbf16>
    "tpu.trace_start"() <{level = 10 : i32, message = "bqd,bkd->bqk"}> : () -> ()
    %cst_20 = arith.constant dense<0.000000e+00> : vector<1x8x8xf32>
    %47 = tpu.matmul %40, %43, %cst_20 {dimension_numbers = #tpu.dot_dimension_numbers<[2], [2], [1], [1], [0, 0, 0, 1, 1, 1], [0], [0]>} : vector<1x8x8xbf16>, vector<1x8x8xbf16>, vector<1x8x8xf32> -> vector<1x8x8xf32>
    "tpu.trace_stop"() : () -> ()
    %cst_21 = arith.constant 0.353553385 : f32
    %48 = vector.broadcast %cst_21 : f32 to vector<1x8x8xf32>
    %49 = arith.mulf %47, %48 : vector<1x8x8xf32>
    %cst_22 = arith.constant dense<0xFF800000> : vector<1x8xf32>
    %50 = vector.multi_reduction <maximumf>, %49, %cst_22 [2] : vector<1x8x8xf32> to vector<1x8xf32>
    %51 = vector.shape_cast %50 : vector<1x8xf32> to vector<1x8x1xf32>
    %52 = vector.broadcast %51 : vector<1x8x1xf32> to vector<1x8x8xf32>
    %53 = arith.subf %49, %52 : vector<1x8x8xf32>
    %54 = math.exp %53 : vector<1x8x8xf32>
    %cst_23 = arith.constant dense<0.000000e+00> : vector<1x8xf32>
    %55 = vector.multi_reduction <add>, %54, %cst_23 [2] : vector<1x8x8xf32> to vector<1x8xf32>
    %56 = vector.shape_cast %55 : vector<1x8xf32> to vector<1x8x1xf32>
    %57 = tpu.reciprocal %56 {approx = true} : vector<1x8x1xf32> -> vector<1x8x1xf32>
    %58 = vector.broadcast %57 : vector<1x8x1xf32> to vector<1x8x8xf32>
    %59 = arith.mulf %54, %58 : vector<1x8x8xf32>
    %60 = arith.truncf %59 : vector<1x8x8xf32> to vector<1x8x8xbf16>
    "tpu.trace_start"() <{level = 10 : i32, message = "bqk,bkd->bqd"}> : () -> ()
    %cst_24 = arith.constant dense<0.000000e+00> : vector<1x8x8xf32>
    %61 = tpu.matmul %60, %46, %cst_24 {dimension_numbers = #tpu.dot_dimension_numbers<[2], [1], [1], [2], [0, 0, 0, 1, 1, 2], [0], [0]>} : vector<1x8x8xbf16>, vector<1x8x8xbf16>, vector<1x8x8xf32> -> vector<1x8x8xf32>
    "tpu.trace_stop"() : () -> ()
    %62 = vector.shape_cast %61 : vector<1x8x8xf32> to vector<8x8xf32>
    %c0_25 = arith.constant 0 : index
    %c0_26 = arith.constant 0 : index
    %63 = vector.load %arg19[%c0_25, %c0_26] : memref<8x32xf32, #tpu.memory_space<vmem>>, vector<8x8xf32>
    tpu.vector_store %arg19[%c0_25, %c0_26], %62 {strides = array<i32>} : memref<8x32xf32, #tpu.memory_space<vmem>>, vector<8x8xf32>,
    %64 = vector.extract_strided_slice %37 {offsets = [0, 8], sizes = [8, 8], strides = [1, 1]} : vector<8x96xf32> to vector<8x8xf32>
    %65 = vector.shape_cast %64 : vector<8x8xf32> to vector<1x8x8xf32>
    %66 = arith.truncf %65 : vector<1x8x8xf32> to vector<1x8x8xbf16>
    %67 = vector.extract_strided_slice %37 {offsets = [0, 40], sizes = [8, 8], strides = [1, 1]} : vector<8x96xf32> to vector<8x8xf32>
    %68 = vector.shape_cast %67 : vector<8x8xf32> to vector<1x8x8xf32>
    %69 = arith.truncf %68 : vector<1x8x8xf32> to vector<1x8x8xbf16>
    %70 = vector.extract_strided_slice %37 {offsets = [0, 72], sizes = [8, 8], strides = [1, 1]} : vector<8x96xf32> to vector<8x8xf32>
    %71 = vector.shape_cast %70 : vector<8x8xf32> to vector<1x8x8xf32>
    %72 = arith.truncf %71 : vector<1x8x8xf32> to vector<1x8x8xbf16>
    "tpu.trace_start"() <{level = 10 : i32, message = "bqd,bkd->bqk"}> : () -> ()
    %cst_27 = arith.constant dense<0.000000e+00> : vector<1x8x8xf32>
    %73 = tpu.matmul %66, %69, %cst_27 {dimension_numbers = #tpu.dot_dimension_numbers<[2], [2], [1], [1], [0, 0, 0, 1, 1, 1], [0], [0]>} : vector<1x8x8xbf16>, vector<1x8x8xbf16>, vector<1x8x8xf32> -> vector<1x8x8xf32>
    "tpu.trace_stop"() : () -> ()
    %cst_28 = arith.constant 0.353553385 : f32
    %74 = vector.broadcast %cst_28 : f32 to vector<1x8x8xf32>
    %75 = arith.mulf %73, %74 : vector<1x8x8xf32>
    %cst_29 = arith.constant dense<0xFF800000> : vector<1x8xf32>
    %76 = vector.multi_reduction <maximumf>, %75, %cst_29 [2] : vector<1x8x8xf32> to vector<1x8xf32>
    %77 = vector.shape_cast %76 : vector<1x8xf32> to vector<1x8x1xf32>
    %78 = vector.broadcast %77 : vector<1x8x1xf32> to vector<1x8x8xf32>
    %79 = arith.subf %75, %78 : vector<1x8x8xf32>
    %80 = math.exp %79 : vector<1x8x8xf32>
    %cst_30 = arith.constant dense<0.000000e+00> : vector<1x8xf32>
    %81 = vector.multi_reduction <add>, %80, %cst_30 [2] : vector<1x8x8xf32> to vector<1x8xf32>
    %82 = vector.shape_cast %81 : vector<1x8xf32> to vector<1x8x1xf32>
    %83 = tpu.reciprocal %82 {approx = true} : vector<1x8x1xf32> -> vector<1x8x1xf32>
    %84 = vector.broadcast %83 : vector<1x8x1xf32> to vector<1x8x8xf32>
    %85 = arith.mulf %80, %84 : vector<1x8x8xf32>
    %86 = arith.truncf %85 : vector<1x8x8xf32> to vector<1x8x8xbf16>
    "tpu.trace_start"() <{level = 10 : i32, message = "bqk,bkd->bqd"}> : () -> ()
    %cst_31 = arith.constant dense<0.000000e+00> : vector<1x8x8xf32>
    %87 = tpu.matmul %86, %72, %cst_31 {dimension_numbers = #tpu.dot_dimension_numbers<[2], [1], [1], [2], [0, 0, 0, 1, 1, 2], [0], [0]>} : vector<1x8x8xbf16>, vector<1x8x8xbf16>, vector<1x8x8xf32> -> vector<1x8x8xf32>
    "tpu.trace_stop"() : () -> ()
    %88 = vector.shape_cast %87 : vector<1x8x8xf32> to vector<8x8xf32>
    %c0_32 = arith.constant 0 : index
    %c8 = arith.constant 8 : index
    %89 = vector.load %arg19[%c0_32, %c8] : memref<8x32xf32, #tpu.memory_space<vmem>>, vector<8x8xf32>
    tpu.vector_store %arg19[%c0_32, %c8], %88 {strides = array<i32>} : memref<8x32xf32, #tpu.memory_space<vmem>>, vector<8x8xf32>,
    %90 = vector.extract_strided_slice %37 {offsets = [0, 16], sizes = [8, 8], strides = [1, 1]} : vector<8x96xf32> to vector<8x8xf32>
    %91 = vector.shape_cast %90 : vector<8x8xf32> to vector<1x8x8xf32>
    %92 = arith.truncf %91 : vector<1x8x8xf32> to vector<1x8x8xbf16>
    %93 = vector.extract_strided_slice %37 {offsets = [0, 48], sizes = [8, 8], strides = [1, 1]} : vector<8x96xf32> to vector<8x8xf32>
    %94 = vector.shape_cast %93 : vector<8x8xf32> to vector<1x8x8xf32>
    %95 = arith.truncf %94 : vector<1x8x8xf32> to vector<1x8x8xbf16>
    %96 = vector.extract_strided_slice %37 {offsets = [0, 80], sizes = [8, 8], strides = [1, 1]} : vector<8x96xf32> to vector<8x8xf32>
    %97 = vector.shape_cast %96 : vector<8x8xf32> to vector<1x8x8xf32>
    %98 = arith.truncf %97 : vector<1x8x8xf32> to vector<1x8x8xbf16>
    "tpu.trace_start"() <{level = 10 : i32, message = "bqd,bkd->bqk"}> : () -> ()
    %cst_33 = arith.constant dense<0.000000e+00> : vector<1x8x8xf32>
    %99 = tpu.matmul %92, %95, %cst_33 {dimension_numbers = #tpu.dot_dimension_numbers<[2], [2], [1], [1], [0, 0, 0, 1, 1, 1], [0], [0]>} : vector<1x8x8xbf16>, vector<1x8x8xbf16>, vector<1x8x8xf32> -> vector<1x8x8xf32>
    "tpu.trace_stop"() : () -> ()
    %cst_34 = arith.constant 0.353553385 : f32
    %100 = vector.broadcast %cst_34 : f32 to vector<1x8x8xf32>
    %101 = arith.mulf %99, %100 : vector<1x8x8xf32>
    %cst_35 = arith.constant dense<0xFF800000> : vector<1x8xf32>
    %102 = vector.multi_reduction <maximumf>, %101, %cst_35 [2] : vector<1x8x8xf32> to vector<1x8xf32>
    %103 = vector.shape_cast %102 : vector<1x8xf32> to vector<1x8x1xf32>
    %104 = vector.broadcast %103 : vector<1x8x1xf32> to vector<1x8x8xf32>
    %105 = arith.subf %101, %104 : vector<1x8x8xf32>
    %106 = math.exp %105 : vector<1x8x8xf32>
    %cst_36 = arith.constant dense<0.000000e+00> : vector<1x8xf32>
    %107 = vector.multi_reduction <add>, %106, %cst_36 [2] : vector<1x8x8xf32> to vector<1x8xf32>
    %108 = vector.shape_cast %107 : vector<1x8xf32> to vector<1x8x1xf32>
    %109 = tpu.reciprocal %108 {approx = true} : vector<1x8x1xf32> -> vector<1x8x1xf32>
    %110 = vector.broadcast %109 : vector<1x8x1xf32> to vector<1x8x8xf32>
    %111 = arith.mulf %106, %110 : vector<1x8x8xf32>
    %112 = arith.truncf %111 : vector<1x8x8xf32> to vector<1x8x8xbf16>
    "tpu.trace_start"() <{level = 10 : i32, message = "bqk,bkd->bqd"}> : () -> ()
    %cst_37 = arith.constant dense<0.000000e+00> : vector<1x8x8xf32>
    %113 = tpu.matmul %112, %98, %cst_37 {dimension_numbers = #tpu.dot_dimension_numbers<[2], [1], [1], [2], [0, 0, 0, 1, 1, 2], [0], [0]>} : vector<1x8x8xbf16>, vector<1x8x8xbf16>, vector<1x8x8xf32> -> vector<1x8x8xf32>
    "tpu.trace_stop"() : () -> ()
    %114 = vector.shape_cast %113 : vector<1x8x8xf32> to vector<8x8xf32>
    %c0_38 = arith.constant 0 : index
    %c16 = arith.constant 16 : index
    %115 = vector.load %arg19[%c0_38, %c16] : memref<8x32xf32, #tpu.memory_space<vmem>>, vector<8x8xf32>
    tpu.vector_store %arg19[%c0_38, %c16], %114 {strides = array<i32>} : memref<8x32xf32, #tpu.memory_space<vmem>>, vector<8x8xf32>,
    %116 = vector.extract_strided_slice %37 {offsets = [0, 24], sizes = [8, 8], strides = [1, 1]} : vector<8x96xf32> to vector<8x8xf32>
    %117 = vector.shape_cast %116 : vector<8x8xf32> to vector<1x8x8xf32>
    %118 = arith.truncf %117 : vector<1x8x8xf32> to vector<1x8x8xbf16>
    %119 = vector.extract_strided_slice %37 {offsets = [0, 56], sizes = [8, 8], strides = [1, 1]} : vector<8x96xf32> to vector<8x8xf32>
    %120 = vector.shape_cast %119 : vector<8x8xf32> to vector<1x8x8xf32>
    %121 = arith.truncf %120 : vector<1x8x8xf32> to vector<1x8x8xbf16>
    %122 = vector.extract_strided_slice %37 {offsets = [0, 88], sizes = [8, 8], strides = [1, 1]} : vector<8x96xf32> to vector<8x8xf32>
    %123 = vector.shape_cast %122 : vector<8x8xf32> to vector<1x8x8xf32>
    %124 = arith.truncf %123 : vector<1x8x8xf32> to vector<1x8x8xbf16>
    "tpu.trace_start"() <{level = 10 : i32, message = "bqd,bkd->bqk"}> : () -> ()
    %cst_39 = arith.constant dense<0.000000e+00> : vector<1x8x8xf32>
    %125 = tpu.matmul %118, %121, %cst_39 {dimension_numbers = #tpu.dot_dimension_numbers<[2], [2], [1], [1], [0, 0, 0, 1, 1, 1], [0], [0]>} : vector<1x8x8xbf16>, vector<1x8x8xbf16>, vector<1x8x8xf32> -> vector<1x8x8xf32>
    "tpu.trace_stop"() : () -> ()
    %cst_40 = arith.constant 0.353553385 : f32
    %126 = vector.broadcast %cst_40 : f32 to vector<1x8x8xf32>
    %127 = arith.mulf %125, %126 : vector<1x8x8xf32>
    %cst_41 = arith.constant dense<0xFF800000> : vector<1x8xf32>
    %128 = vector.multi_reduction <maximumf>, %127, %cst_41 [2] : vector<1x8x8xf32> to vector<1x8xf32>
    %129 = vector.shape_cast %128 : vector<1x8xf32> to vector<1x8x1xf32>
    %130 = vector.broadcast %129 : vector<1x8x1xf32> to vector<1x8x8xf32>
    %131 = arith.subf %127, %130 : vector<1x8x8xf32>
    %132 = math.exp %131 : vector<1x8x8xf32>
    %cst_42 = arith.constant dense<0.000000e+00> : vector<1x8xf32>
    %133 = vector.multi_reduction <add>, %132, %cst_42 [2] : vector<1x8x8xf32> to vector<1x8xf32>
    %134 = vector.shape_cast %133 : vector<1x8xf32> to vector<1x8x1xf32>
    %135 = tpu.reciprocal %134 {approx = true} : vector<1x8x1xf32> -> vector<1x8x1xf32>
    %136 = vector.broadcast %135 : vector<1x8x1xf32> to vector<1x8x8xf32>
    %137 = arith.mulf %132, %136 : vector<1x8x8xf32>
    %138 = arith.truncf %137 : vector<1x8x8xf32> to vector<1x8x8xbf16>
    "tpu.trace_start"() <{level = 10 : i32, message = "bqk,bkd->bqd"}> : () -> ()
    %cst_43 = arith.constant dense<0.000000e+00> : vector<1x8x8xf32>
    %139 = tpu.matmul %138, %124, %cst_43 {dimension_numbers = #tpu.dot_dimension_numbers<[2], [1], [1], [2], [0, 0, 0, 1, 1, 2], [0], [0]>} : vector<1x8x8xbf16>, vector<1x8x8xbf16>, vector<1x8x8xf32> -> vector<1x8x8xf32>
    "tpu.trace_stop"() : () -> ()
    %140 = vector.shape_cast %139 : vector<1x8x8xf32> to vector<8x8xf32>
    %c0_44 = arith.constant 0 : index
    %c24 = arith.constant 24 : index
    %141 = vector.load %arg19[%c0_44, %c24] : memref<8x32xf32, #tpu.memory_space<vmem>>, vector<8x8xf32>
    tpu.vector_store %arg19[%c0_44, %c24], %140 {strides = array<i32>} : memref<8x32xf32, #tpu.memory_space<vmem>>, vector<8x8xf32>,
    %c0_45 = arith.constant 0 : index
    %c0_46 = arith.constant 0 : index
    %142 = vector.load %arg19[%c0_45, %c0_46] : memref<8x32xf32, #tpu.memory_space<vmem>>, vector<8x32xf32>
    %c0_47 = arith.constant 0 : index
    %c0_48 = arith.constant 0 : index
    %c0_49 = arith.constant 0 : index
    %143 = vector.load %arg8[%c0_47, %c0_48, %c0_49] : memref<1x32x32xbf16, #tpu.memory_space<vmem>>, vector<1x32x32xbf16>
    %144 = vector.shape_cast %143 : vector<1x32x32xbf16> to vector<32x32xbf16>
    %145 = arith.truncf %142 : vector<8x32xf32> to vector<8x32xbf16>
    %cst_50 = arith.constant dense<0.000000e+00> : vector<8x32xf32>
    %146 = tpu.matmul %145, %144, %cst_50 {dimension_numbers = #tpu.dot_dimension_numbers<[1], [0], [0], [1], [0, 0, 1, 1], [], []>} : vector<8x32xbf16>, vector<32x32xbf16>, vector<8x32xf32> -> vector<8x32xf32>
    %147 = arith.addf %4, %146 : vector<8x32xf32>
    %c0_51 = arith.constant 0 : index
    %c0_52 = arith.constant 0 : index
    %c0_53 = arith.constant 0 : index
    %148 = vector.load %arg9[%c0_51, %c0_52, %c0_53] : memref<1x1x32xf32, #tpu.memory_space<vmem>>, vector<1x1x32xf32>
    %149 = vector.shape_cast %148 : vector<1x1x32xf32> to vector<1x32xf32>
    %150 = vector.broadcast %149 : vector<1x32xf32> to vector<8x32xf32>
    %151 = arith.addf %147, %150 : vector<8x32xf32>
    %c0_54 = arith.constant 0 : index
    %c0_55 = arith.constant 0 : index
    %c0_56 = arith.constant 0 : index
    %152 = vector.load %arg10[%c0_54, %c0_55, %c0_56] : memref<1x1x32xf32, #tpu.memory_space<vmem>>, vector<1x1x32xf32>
    %153 = vector.shape_cast %152 : vector<1x1x32xf32> to vector<1x32xf32>
    %c0_57 = arith.constant 0 : index
    %c0_58 = arith.constant 0 : index
    %c0_59 = arith.constant 0 : index
    %154 = vector.load %arg11[%c0_57, %c0_58, %c0_59] : memref<1x1x32xf32, #tpu.memory_space<vmem>>, vector<1x1x32xf32>
    %155 = vector.shape_cast %154 : vector<1x1x32xf32> to vector<1x32xf32>
    %cst_60 = arith.constant dense<0.000000e+00> : vector<8xf32>
    %156 = vector.multi_reduction <add>, %151, %cst_60 [1] : vector<8x32xf32> to vector<8xf32>
    %157 = vector.shape_cast %156 : vector<8xf32> to vector<8x1xf32>
    %cst_61 = arith.constant 3.200000e+01 : f32
    %158 = vector.broadcast %cst_61 : f32 to vector<8x1xf32>
    %159 = arith.divf %157, %158 : vector<8x1xf32>
    %160 = vector.broadcast %159 : vector<8x1xf32> to vector<8x32xf32>
    %161 = arith.subf %151, %160 : vector<8x32xf32>
    %162 = arith.mulf %161, %161 : vector<8x32xf32>
    %cst_62 = arith.constant dense<0.000000e+00> : vector<8xf32>
    %163 = vector.multi_reduction <add>, %162, %cst_62 [1] : vector<8x32xf32> to vector<8xf32>
    %164 = vector.shape_cast %163 : vector<8xf32> to vector<8x1xf32>
    %cst_63 = arith.constant 0.0322580636 : f32
    %165 = vector.broadcast %cst_63 : f32 to vector<8x1xf32>
    %166 = arith.mulf %164, %165 : vector<8x1xf32>
    %167 = math.sqrt %166 : vector<8x1xf32>
    %cst_64 = arith.constant 9.99999997E-7 : f32
    %168 = vector.broadcast %cst_64 : f32 to vector<8x1xf32>
    %169 = arith.addf %167, %168 : vector<8x1xf32>
    %170 = tpu.reciprocal %169 : vector<8x1xf32> -> vector<8x1xf32>
    %171 = vector.broadcast %153 : vector<1x32xf32> to vector<8x32xf32>
    %172 = arith.mulf %171, %161 : vector<8x32xf32>
    %173 = vector.broadcast %170 : vector<8x1xf32> to vector<8x32xf32>
    %174 = arith.mulf %172, %173 : vector<8x32xf32>
    %175 = vector.broadcast %155 : vector<1x32xf32> to vector<8x32xf32>
    %176 = arith.addf %174, %175 : vector<8x32xf32>
    %cst_65 = arith.constant 0.000000e+00 : f32
    %177 = vector.broadcast %cst_65 : f32 to vector<8x32xf32>
    %c0_66 = arith.constant 0 : index
    %c0_67 = arith.constant 0 : index
    %c0_68 = arith.constant 0 : index
    %178 = vector.load %arg12[%c0_66, %c0_67, %c0_68] : memref<1x32x64xbf16, #tpu.memory_space<vmem>>, vector<1x32x64xbf16>
    %179 = vector.shape_cast %178 : vector<1x32x64xbf16> to vector<32x64xbf16>
    %180 = arith.truncf %176 : vector<8x32xf32> to vector<8x32xbf16>
    %cst_69 = arith.constant dense<0.000000e+00> : vector<8x64xf32>
    %181 = tpu.matmul %180, %179, %cst_69 {dimension_numbers = #tpu.dot_dimension_numbers<[1], [0], [0], [1], [0, 0, 1, 1], [], []>} : vector<8x32xbf16>, vector<32x64xbf16>, vector<8x64xf32> -> vector<8x64xf32>
    %c0_70 = arith.constant 0 : index
    %c0_71 = arith.constant 0 : index
    %c0_72 = arith.constant 0 : index
    %182 = vector.load %arg13[%c0_70, %c0_71, %c0_72] : memref<1x1x64xf32, #tpu.memory_space<vmem>>, vector<1x1x64xf32>
    %183 = vector.shape_cast %182 : vector<1x1x64xf32> to vector<1x64xf32>
    %184 = vector.broadcast %183 : vector<1x64xf32> to vector<8x64xf32>
    %185 = arith.addf %181, %184 : vector<8x64xf32>
    %cst_73 = arith.constant 0.000000e+00 : f32
    %186 = vector.broadcast %cst_73 : f32 to vector<8x64xf32>
    %187 = arith.maximumf %185, %186 : vector<8x64xf32>
    %c0_74 = arith.constant 0 : index
    %c0_75 = arith.constant 0 : index
    %c0_76 = arith.constant 0 : index
    %188 = vector.load %arg14[%c0_74, %c0_75, %c0_76] : memref<1x64x32xbf16, #tpu.memory_space<vmem>>, vector<1x64x32xbf16>
    %189 = vector.shape_cast %188 : vector<1x64x32xbf16> to vector<64x32xbf16>
    %190 = arith.truncf %187 : vector<8x64xf32> to vector<8x64xbf16>
    %cst_77 = arith.constant dense<0.000000e+00> : vector<8x32xf32>
    %191 = tpu.matmul %190, %189, %cst_77 {dimension_numbers = #tpu.dot_dimension_numbers<[1], [0], [0], [1], [0, 0, 1, 1], [], []>} : vector<8x64xbf16>, vector<64x32xbf16>, vector<8x32xf32> -> vector<8x32xf32>
    %192 = arith.addf %177, %191 : vector<8x32xf32>
    %193 = arith.addf %151, %192 : vector<8x32xf32>
    %c0_78 = arith.constant 0 : index
    %c0_79 = arith.constant 0 : index
    %c0_80 = arith.constant 0 : index
    %194 = vector.load %arg15[%c0_78, %c0_79, %c0_80] : memref<1x1x32xf32, #tpu.memory_space<vmem>>, vector<1x1x32xf32>
    %195 = vector.shape_cast %194 : vector<1x1x32xf32> to vector<1x32xf32>
    %196 = vector.broadcast %195 : vector<1x32xf32> to vector<8x32xf32>
    %197 = arith.addf %193, %196 : vector<8x32xf32>
    %198 = vector.shape_cast %197 : vector<8x32xf32> to vector<1x8x32xf32>
    %c0_81 = arith.constant 0 : index
    %c0_82 = arith.constant 0 : index
    %c0_83 = arith.constant 0 : index
    %199 = vector.load %arg18[%c0_81, %c0_82, %c0_83] : memref<1x8x32xf32, #tpu.memory_space<vmem>>, vector<1x8x32xf32>
    tpu.vector_store %arg18[%c0_81, %c0_82, %c0_83], %198 {strides = array<i32>} : memref<1x8x32xf32, #tpu.memory_space<vmem>>, vector<1x8x32xf32>,
    %c1_i32 = arith.constant 1 : i32
    %200 = arith.cmpi eq, %arg1, %c1_i32 : i32
    %201 = arith.extui %200 : i1 to i32
    %c0_i32_84 = arith.constant 0 : i32
    %202 = arith.cmpi ne, %201, %c0_i32_84 : i32
    scf.if %202 {
      %c0_85 = arith.constant 0 : index
      %c0_86 = arith.constant 0 : index
      %203 = vector.load %arg16[%c0_85, %c0_86] : memref<1x32xf32, #tpu.memory_space<vmem>>, vector<1x32xf32>
      %c0_87 = arith.constant 0 : index
      %c0_88 = arith.constant 0 : index
      %204 = vector.load %arg17[%c0_87, %c0_88] : memref<1x32xf32, #tpu.memory_space<vmem>>, vector<1x32xf32>
      %cst_89 = arith.constant dense<0.000000e+00> : vector<8xf32>
      %205 = vector.multi_reduction <add>, %197, %cst_89 [1] : vector<8x32xf32> to vector<8xf32>
      %206 = vector.shape_cast %205 : vector<8xf32> to vector<8x1xf32>
      %cst_90 = arith.constant 3.200000e+01 : f32
      %207 = vector.broadcast %cst_90 : f32 to vector<8x1xf32>
      %208 = arith.divf %206, %207 : vector<8x1xf32>
      %209 = vector.broadcast %208 : vector<8x1xf32> to vector<8x32xf32>
      %210 = arith.subf %197, %209 : vector<8x32xf32>
      %211 = arith.mulf %210, %210 : vector<8x32xf32>
      %cst_91 = arith.constant dense<0.000000e+00> : vector<8xf32>
      %212 = vector.multi_reduction <add>, %211, %cst_91 [1] : vector<8x32xf32> to vector<8xf32>
      %213 = vector.shape_cast %212 : vector<8xf32> to vector<8x1xf32>
      %cst_92 = arith.constant 0.0322580636 : f32
      %214 = vector.broadcast %cst_92 : f32 to vector<8x1xf32>
      %215 = arith.mulf %213, %214 : vector<8x1xf32>
      %216 = math.sqrt %215 : vector<8x1xf32>
      %cst_93 = arith.constant 9.99999997E-7 : f32
      %217 = vector.broadcast %cst_93 : f32 to vector<8x1xf32>
      %218 = arith.addf %216, %217 : vector<8x1xf32>
      %219 = tpu.reciprocal %218 : vector<8x1xf32> -> vector<8x1xf32>
      %220 = vector.broadcast %203 : vector<1x32xf32> to vector<8x32xf32>
      %221 = arith.mulf %220, %210 : vector<8x32xf32>
      %222 = vector.broadcast %219 : vector<8x1xf32> to vector<8x32xf32>
      %223 = arith.mulf %221, %222 : vector<8x32xf32>
      %224 = vector.broadcast %204 : vector<1x32xf32> to vector<8x32xf32>
      %225 = arith.addf %223, %224 : vector<8x32xf32>
      %226 = vector.shape_cast %225 : vector<8x32xf32> to vector<1x8x32xf32>
      %c0_94 = arith.constant 0 : index
      %c0_95 = arith.constant 0 : index
      %c0_96 = arith.constant 0 : index
      %227 = vector.load %arg18[%c0_94, %c0_95, %c0_96] : memref<1x8x32xf32, #tpu.memory_space<vmem>>, vector<1x8x32xf32>
      tpu.vector_store %arg18[%c0_94, %c0_95, %c0_96], %226 {strides = array<i32>} : memref<1x8x32xf32, #tpu.memory_space<vmem>>, vector<1x8x32xf32>,
    } else {
    }
    return
  }
  func.func @transform_0(%arg0: i32, %arg1: i32) -> (i32, i32, i32) {
    %c0_i32 = arith.constant 0 : i32
    %c0_i32_0 = arith.constant 0 : i32
    %c0_i32_1 = arith.constant 0 : i32
    return %arg0, %c0_i32, %c0_i32_0 : i32, i32, i32
  }
  func.func @transform_1(%arg0: i32, %arg1: i32) -> (i32, i32) {
    %c0_i32 = arith.constant 0 : i32
    %c0_i32_0 = arith.constant 0 : i32
    %c0_i32_1 = arith.constant 0 : i32
    return %c0_i32, %c0_i32_0 : i32, i32
  }
  func.func @transform_2(%arg0: i32, %arg1: i32) -> (i32, i32, i32) {
    %c0_i32 = arith.constant 0 : i32
    %c0_i32_0 = arith.constant 0 : i32
    %c0_i32_1 = arith.constant 0 : i32
    return %arg1, %c0_i32, %c0_i32_0 : i32, i32, i32
  }
  func.func @transform_3(%arg0: i32, %arg1: i32) -> (i32, i32, i32) {
    %c0_i32 = arith.constant 0 : i32
    %c0_i32_0 = arith.constant 0 : i32
    %c0_i32_1 = arith.constant 0 : i32
    return %arg1, %c0_i32, %c0_i32_0 : i32, i32, i32
  }
  func.func @transform_4(%arg0: i32, %arg1: i32) -> (i32, i32, i32) {
    %c0_i32 = arith.constant 0 : i32
    %c0_i32_0 = arith.constant 0 : i32
    %c0_i32_1 = arith.constant 0 : i32
    return %arg1, %c0_i32, %c0_i32_0 : i32, i32, i32
  }
  func.func @transform_5(%arg0: i32, %arg1: i32) -> (i32, i32, i32) {
    %c0_i32 = arith.constant 0 : i32
    %c0_i32_0 = arith.constant 0 : i32
    %c0_i32_1 = arith.constant 0 : i32
    return %arg1, %c0_i32, %c0_i32_0 : i32, i32, i32
  }
  func.func @transform_6(%arg0: i32, %arg1: i32) -> (i32, i32, i32) {
    %c0_i32 = arith.constant 0 : i32
    %c0_i32_0 = arith.constant 0 : i32
    %c0_i32_1 = arith.constant 0 : i32
    return %arg1, %c0_i32, %c0_i32_0 : i32, i32, i32
  }
  func.func @transform_7(%arg0: i32, %arg1: i32) -> (i32, i32, i32) {
    %c0_i32 = arith.constant 0 : i32
    %c0_i32_0 = arith.constant 0 : i32
    %c0_i32_1 = arith.constant 0 : i32
    return %arg1, %c0_i32, %c0_i32_0 : i32, i32, i32
  }
  func.func @transform_8(%arg0: i32, %arg1: i32) -> (i32, i32, i32) {
    %c0_i32 = arith.constant 0 : i32
    %c0_i32_0 = arith.constant 0 : i32
    %c0_i32_1 = arith.constant 0 : i32
    return %arg1, %c0_i32, %c0_i32_0 : i32, i32, i32
  }
  func.func @transform_9(%arg0: i32, %arg1: i32) -> (i32, i32, i32) {
    %c0_i32 = arith.constant 0 : i32
    %c0_i32_0 = arith.constant 0 : i32
    %c0_i32_1 = arith.constant 0 : i32
    return %arg1, %c0_i32, %c0_i32_0 : i32, i32, i32
  }
  func.func @transform_10(%arg0: i32, %arg1: i32) -> (i32, i32, i32) {
    %c0_i32 = arith.constant 0 : i32
    %c0_i32_0 = arith.constant 0 : i32
    %c0_i32_1 = arith.constant 0 : i32
    return %arg1, %c0_i32, %c0_i32_0 : i32, i32, i32
  }
  func.func @transform_11(%arg0: i32, %arg1: i32) -> (i32, i32, i32) {
    %c0_i32 = arith.constant 0 : i32
    %c0_i32_0 = arith.constant 0 : i32
    %c0_i32_1 = arith.constant 0 : i32
    return %arg1, %c0_i32, %c0_i32_0 : i32, i32, i32
  }
  func.func @transform_12(%arg0: i32, %arg1: i32) -> (i32, i32, i32) {
    %c0_i32 = arith.constant 0 : i32
    %c0_i32_0 = arith.constant 0 : i32
    %c0_i32_1 = arith.constant 0 : i32
    return %arg1, %c0_i32, %c0_i32_0 : i32, i32, i32
  }
  func.func @transform_13(%arg0: i32, %arg1: i32) -> (i32, i32, i32) {
    %c0_i32 = arith.constant 0 : i32
    %c0_i32_0 = arith.constant 0 : i32
    %c0_i32_1 = arith.constant 0 : i32
    return %arg1, %c0_i32, %c0_i32_0 : i32, i32, i32
  }
  func.func @transform_14(%arg0: i32, %arg1: i32) -> (i32, i32) {
    %c0_i32 = arith.constant 0 : i32
    %c0_i32_0 = arith.constant 0 : i32
    %c0_i32_1 = arith.constant 0 : i32
    return %c0_i32, %c0_i32_0 : i32, i32
  }
  func.func @transform_15(%arg0: i32, %arg1: i32) -> (i32, i32) {
    %c0_i32 = arith.constant 0 : i32
    %c0_i32_0 = arith.constant 0 : i32
    %c0_i32_1 = arith.constant 0 : i32
    return %c0_i32, %c0_i32_0 : i32, i32
  }
  func.func @transform_16(%arg0: i32, %arg1: i32) -> (i32, i32, i32) {
    %c0_i32 = arith.constant 0 : i32
    %c0_i32_0 = arith.constant 0 : i32
    %c0_i32_1 = arith.constant 0 : i32
    return %arg0, %c0_i32, %c0_i32_0 : i32, i32, i32
  }
}

</mosaic_0001>

<llo_original>
// kernel: _lambda_.1
$region0: #{_lambda_.1}
  #allocation0 [shape = 'u32[]', space=smem, size = 0x4, offset = 0x4, fixed_abs, tag = 'smem constant byte address 0x4 - core index']
  #allocation1 [shape = 'u32[144,128]{1,0:T(1,128)}', space=vmem, size = 0x12000, scoped, tag = 'internal scratch']
  #allocation2 [shape = 'f32[8,32]{1,0:T(8,128)}', space=vmem, size = 0x1000, scoped, tag = 'scratch operand']
  %s0 = inlined_call_operand.vmem [shape: f32[2,8,32], index: 0, kind: input, shape index: {}]
  %s1 = inlined_call_operand.vmem [shape: f32[8,32], index: 1, kind: input, shape index: {}]
  %s2 = inlined_call_operand.vmem [shape: f32[2,1,32], index: 2, kind: input, shape index: {}]
  %s3 = inlined_call_operand.vmem [shape: f32[2,1,32], index: 3, kind: input, shape index: {}]
  %s4 = inlined_call_operand.vmem [shape: bf16[2,32,96], index: 4, kind: input, shape index: {}]
  %s5 = inlined_call_operand.vmem [shape: f32[2,1,96], index: 5, kind: input, shape index: {}]
  %s6 = inlined_call_operand.vmem [shape: bf16[2,32,32], index: 6, kind: input, shape index: {}]
  %s7 = inlined_call_operand.vmem [shape: f32[2,1,32], index: 7, kind: input, shape index: {}]
  %s8 = inlined_call_operand.vmem [shape: f32[2,1,32], index: 8, kind: input, shape index: {}]
  %s9 = inlined_call_operand.vmem [shape: f32[2,1,32], index: 9, kind: input, shape index: {}]
  %s10 = inlined_call_operand.vmem [shape: bf16[2,32,64], index: 10, kind: input, shape index: {}]
  %s11 = inlined_call_operand.vmem [shape: f32[2,1,64], index: 11, kind: input, shape index: {}]
  %s12 = inlined_call_operand.vmem [shape: bf16[2,64,32], index: 12, kind: input, shape index: {}]
  %s13 = inlined_call_operand.vmem [shape: f32[2,1,32], index: 13, kind: input, shape index: {}]
  %s14 = inlined_call_operand.vmem [shape: f32[1,32], index: 14, kind: input, shape index: {}]
  %s15 = inlined_call_operand.vmem [shape: f32[1,32], index: 15, kind: input, shape index: {}]
  %s16 = inlined_call_operand.hbm [shape: f32[2,8,32], index: 16, kind: output, shape index: {}]
  %s17 = sld [smem:[#allocation0]]
  $region105: #{_lambda_.1} parent=0
    _
  %s19 = ssub.s32 1, %s17
  %s20 = scalar_select 0, %s19, %s17
  $region1: #{_lambda_.1} parent=0
    #allocation3 [shape = 'u8[8192]{0}', space=vmem, size = 0x2000, scoped, tag = 'output window, operand 0']
    #allocation4 [shape = 's32[2]{0}', space=sflag, size = 0x8, scoped, tag = 'scoped memory for _lambda_.1']
    %21 = vsyncpa [#allocation4], 0
    %s22 = scalar_lea.sflag [#allocation4], 1
    %23 = vsyncpa %s22, 0
    loop: start=0, step=1, limit=6
    $region2: #{_lambda_.1} parent=1 // loop_pre_header
      _
    $region3: #{_lambda_.1} parent=1 // loop_header
      %s25 = sphi 0, %s29
      %p26 = scmp.ge.s32.totalorder %s25, 6
      %s32 = sphi 0, %s44
      %s33 = sphi 0, %s40
      %s34 = sphi 0, %s32
      %s35 = sphi 0, %s33
      %s36 = sphi 0, %s34
      %s37 = sphi 0, %s35
      %s47 = sphi 0, %s49
      %s50 = sphi 0, %s47
      %s51 = sphi 0, %s50
      %s67 = sphi 0, %s51
      %s71 = sphi 0, %s71
      %s73 = sphi 0, %s71
      %s74 = sphi 0, %s73
      %s88 = sphi 0, %s74
      %s94 = sphi 0, %s96
      %s97 = sphi 0, %s94
      %s98 = sphi 0, %s97
      %s114 = sphi 0, %s98
      %s120 = sphi 0, %s122
      %s123 = sphi 0, %s120
      %s124 = sphi 0, %s123
      %s140 = sphi 0, %s124
      %s146 = sphi 0, %s148
      %s149 = sphi 0, %s146
      %s150 = sphi 0, %s149
      %s166 = sphi 0, %s150
      %s172 = sphi 0, %s174
      %s175 = sphi 0, %s172
      %s176 = sphi 0, %s175
      %s192 = sphi 0, %s176
      %s198 = sphi 0, %s200
      %s201 = sphi 0, %s198
      %s202 = sphi 0, %s201
      %s218 = sphi 0, %s202
      %s224 = sphi 0, %s226
      %s227 = sphi 0, %s224
      %s228 = sphi 0, %s227
      %s244 = sphi 0, %s228
      %s250 = sphi 0, %s252
      %s253 = sphi 0, %s250
      %s254 = sphi 0, %s253
      %s270 = sphi 0, %s254
      %s276 = sphi 0, %s278
      %s279 = sphi 0, %s276
      %s280 = sphi 0, %s279
      %s296 = sphi 0, %s280
      %s302 = sphi 0, %s304
      %s305 = sphi 0, %s302
      %s306 = sphi 0, %s305
      %s322 = sphi 0, %s306
      %s328 = sphi 0, %s330
      %s331 = sphi 0, %s328
      %s332 = sphi 0, %s331
      %s348 = sphi 0, %s332
      %s354 = sphi 0, %s356
      %s357 = sphi 0, %s354
      %s358 = sphi 0, %s357
      %s374 = sphi 0, %s358
      %s380 = sphi 0, %s382
      %s383 = sphi 0, %s380
      %s384 = sphi 0, %s383
      %s400 = sphi 0, %s384
      %s404 = sphi 0, %s404
      %s406 = sphi 0, %s404
      %s407 = sphi 0, %s406
      %s421 = sphi 0, %s407
      %s425 = sphi 0, %s425
      %s427 = sphi 0, %s425
      %s428 = sphi 0, %s427
      %s442 = sphi 0, %s428
      %s448 = sphi 0, %s450
      %s451 = sphi 0, %s448
      %s452 = sphi 0, %s451
      %s468 = sphi 0, %s452
    $region4: #{_lambda_.1} parent=1 // loop_header_branch
      %28 = sbr.rel (%p26) target = $region8
    $region5: #{_lambda_.1} parent=1 // loop_body
      %s30 = ssub.s32 %s25, 1
      %s31 = ssub.s32 %s25, 2
      %s38 = sadd.s32 1, %s33
      %p39 = scmp.ge.s32.totalorder %s38, 2
      %s40 = scalar_select %p39, 0, %s38
      %s41 = sadd.s32 1, %s32
      %s42 = scalar_select %p39, %s41, %s32
      %p43 = scmp.ge.s32.totalorder %s42, 2
      %s44 = scalar_select %p43, 0, %s42
      %s45 = ssub.s32 %s32, %s44
      %p46 = scmp.eq.s32.totalorder %s45, 0
      %s48 = sadd.s32 %s47, 1
      %s49 = scalar_select %p46, %s47, %s48
      %p52 = pneg %p46
      %p53 = scmp.eq.s32.totalorder %s25, 3
      %p54 = por %p52, %p53
      %p55 = scmp.ne.s32.totalorder %s47, %s50
      %p56 = scmp.eq.s32.totalorder %s25, 0
      %p57 = por %p55, %p56
      %p58 = scmp.ne.s32.totalorder %s47, %s50
      %p59 = scmp.eq.s32.totalorder %s30, 3
      %p60 = por %p58, %p59
      %p61 = scmp.ne.s32.totalorder %s50, %s51
      %p62 = scmp.eq.s32.totalorder %s30, 0
      %p63 = por %p61, %p62
      %p64 = scmp.ne.s32.totalorder %s50, %s51
      %p65 = scmp.eq.s32.totalorder %s31, 3
      %p66 = por %p64, %p65
      %p68 = scmp.ne.s32.totalorder %s51, %s67
      %p69 = scmp.eq.s32.totalorder %s31, 0
      %p70 = por %p68, %p69
      %s72 = sadd.s32 %s71, 1
      %p75 = scmp.eq.s32.totalorder %s25, 3
      %p76 = scmp.ne.s32.totalorder %s71, %s73
      %p77 = scmp.eq.s32.totalorder %s25, 0
      %p78 = por %p76, %p77
      %p79 = scmp.ne.s32.totalorder %s71, %s73
      %p80 = scmp.eq.s32.totalorder %s30, 3
      %p81 = por %p79, %p80
      %p82 = scmp.ne.s32.totalorder %s73, %s74
      %p83 = scmp.eq.s32.totalorder %s30, 0
      %p84 = por %p82, %p83
      %p85 = scmp.ne.s32.totalorder %s73, %s74
      %p86 = scmp.eq.s32.totalorder %s31, 3
      %p87 = por %p85, %p86
      %p89 = scmp.ne.s32.totalorder %s74, %s88
      %p90 = scmp.eq.s32.totalorder %s31, 0
      %p91 = por %p89, %p90
      %s92 = ssub.s32 %s33, %s40
      %p93 = scmp.eq.s32.totalorder %s92, 0
      %s95 = sadd.s32 %s94, 1
      %s96 = scalar_select %p93, %s94, %s95
      %p99 = pneg %p93
      %p100 = scmp.eq.s32.totalorder %s25, 3
      %p101 = por %p99, %p100
      %p102 = scmp.ne.s32.totalorder %s94, %s97
      %p103 = scmp.eq.s32.totalorder %s25, 0
      %p104 = por %p102, %p103
      %p105 = scmp.ne.s32.totalorder %s94, %s97
      %p106 = scmp.eq.s32.totalorder %s30, 3
      %p107 = por %p105, %p106
      %p108 = scmp.ne.s32.totalorder %s97, %s98
      %p109 = scmp.eq.s32.totalorder %s30, 0
      %p110 = por %p108, %p109
      %p111 = scmp.ne.s32.totalorder %s97, %s98
      %p112 = scmp.eq.s32.totalorder %s31, 3
      %p113 = por %p111, %p112
      %p115 = scmp.ne.s32.totalorder %s98, %s114
      %p116 = scmp.eq.s32.totalorder %s31, 0
      %p117 = por %p115, %p116
      %s118 = ssub.s32 %s33, %s40
      %p119 = scmp.eq.s32.totalorder %s118, 0
      %s121 = sadd.s32 %s120, 1
      %s122 = scalar_select %p119, %s120, %s121
      %p125 = pneg %p119
      %p126 = scmp.eq.s32.totalorder %s25, 3
      %p127 = por %p125, %p126
      %p128 = scmp.ne.s32.totalorder %s120, %s123
      %p129 = scmp.eq.s32.totalorder %s25, 0
      %p130 = por %p128, %p129
      %p131 = scmp.ne.s32.totalorder %s120, %s123
      %p132 = scmp.eq.s32.totalorder %s30, 3
      %p133 = por %p131, %p132
      %p134 = scmp.ne.s32.totalorder %s123, %s124
      %p135 = scmp.eq.s32.totalorder %s30, 0
      %p136 = por %p134, %p135
      %p137 = scmp.ne.s32.totalorder %s123, %s124
      %p138 = scmp.eq.s32.totalorder %s31, 3
      %p139 = por %p137, %p138
      %p141 = scmp.ne.s32.totalorder %s124, %s140
      %p142 = scmp.eq.s32.totalorder %s31, 0
      %p143 = por %p141, %p142
      %s144 = ssub.s32 %s33, %s40
      %p145 = scmp.eq.s32.totalorder %s144, 0
      %s147 = sadd.s32 %s146, 1
      %s148 = scalar_select %p145, %s146, %s147
      %p151 = pneg %p145
      %p152 = scmp.eq.s32.totalorder %s25, 3
      %p153 = por %p151, %p152
      %p154 = scmp.ne.s32.totalorder %s146, %s149
      %p155 = scmp.eq.s32.totalorder %s25, 0
      %p156 = por %p154, %p155
      %p157 = scmp.ne.s32.totalorder %s146, %s149
      %p158 = scmp.eq.s32.totalorder %s30, 3
      %p159 = por %p157, %p158
      %p160 = scmp.ne.s32.totalorder %s149, %s150
      %p161 = scmp.eq.s32.totalorder %s30, 0
      %p162 = por %p160, %p161
      %p163 = scmp.ne.s32.totalorder %s149, %s150
      %p164 = scmp.eq.s32.totalorder %s31, 3
      %p165 = por %p163, %p164
      %p167 = scmp.ne.s32.totalorder %s150, %s166
      %p168 = scmp.eq.s32.totalorder %s31, 0
      %p169 = por %p167, %p168
      %s170 = ssub.s32 %s33, %s40
      %p171 = scmp.eq.s32.totalorder %s170, 0
      %s173 = sadd.s32 %s172, 1
      %s174 = scalar_select %p171, %s172, %s173
      %p177 = pneg %p171
      %p178 = scmp.eq.s32.totalorder %s25, 3
      %p179 = por %p177, %p178
      %p180 = scmp.ne.s32.totalorder %s172, %s175
      %p181 = scmp.eq.s32.totalorder %s25, 0
      %p182 = por %p180, %p181
      %p183 = scmp.ne.s32.totalorder %s172, %s175
      %p184 = scmp.eq.s32.totalorder %s30, 3
      %p185 = por %p183, %p184
      %p186 = scmp.ne.s32.totalorder %s175, %s176
      %p187 = scmp.eq.s32.totalorder %s30, 0
      %p188 = por %p186, %p187
      %p189 = scmp.ne.s32.totalorder %s175, %s176
      %p190 = scmp.eq.s32.totalorder %s31, 3
      %p191 = por %p189, %p190
      %p193 = scmp.ne.s32.totalorder %s176, %s192
      %p194 = scmp.eq.s32.totalorder %s31, 0
      %p195 = por %p193, %p194
      %s196 = ssub.s32 %s33, %s40
      %p197 = scmp.eq.s32.totalorder %s196, 0
      %s199 = sadd.s32 %s198, 1
      %s200 = scalar_select %p197, %s198, %s199
      %p203 = pneg %p197
      %p204 = scmp.eq.s32.totalorder %s25, 3
      %p205 = por %p203, %p204
      %p206 = scmp.ne.s32.totalorder %s198, %s201
      %p207 = scmp.eq.s32.totalorder %s25, 0
      %p208 = por %p206, %p207
      %p209 = scmp.ne.s32.totalorder %s198, %s201
      %p210 = scmp.eq.s32.totalorder %s30, 3
      %p211 = por %p209, %p210
      %p212 = scmp.ne.s32.totalorder %s201, %s202
      %p213 = scmp.eq.s32.totalorder %s30, 0
      %p214 = por %p212, %p213
      %p215 = scmp.ne.s32.totalorder %s201, %s202
      %p216 = scmp.eq.s32.totalorder %s31, 3
      %p217 = por %p215, %p216
      %p219 = scmp.ne.s32.totalorder %s202, %s218
      %p220 = scmp.eq.s32.totalorder %s31, 0
      %p221 = por %p219, %p220
      %s222 = ssub.s32 %s33, %s40
      %p223 = scmp.eq.s32.totalorder %s222, 0
      %s225 = sadd.s32 %s224, 1
      %s226 = scalar_select %p223, %s224, %s225
      %p229 = pneg %p223
      %p230 = scmp.eq.s32.totalorder %s25, 3
      %p231 = por %p229, %p230
      %p232 = scmp.ne.s32.totalorder %s224, %s227
      %p233 = scmp.eq.s32.totalorder %s25, 0
      %p234 = por %p232, %p233
      %p235 = scmp.ne.s32.totalorder %s224, %s227
      %p236 = scmp.eq.s32.totalorder %s30, 3
      %p237 = por %p235, %p236
      %p238 = scmp.ne.s32.totalorder %s227, %s228
      %p239 = scmp.eq.s32.totalorder %s30, 0
      %p240 = por %p238, %p239
      %p241 = scmp.ne.s32.totalorder %s227, %s228
      %p242 = scmp.eq.s32.totalorder %s31, 3
      %p243 = por %p241, %p242
      %p245 = scmp.ne.s32.totalorder %s228, %s244
      %p246 = scmp.eq.s32.totalorder %s31, 0
      %p247 = por %p245, %p246
      %s248 = ssub.s32 %s33, %s40
      %p249 = scmp.eq.s32.totalorder %s248, 0
      %s251 = sadd.s32 %s250, 1
      %s252 = scalar_select %p249, %s250, %s251
      %p255 = pneg %p249
      %p256 = scmp.eq.s32.totalorder %s25, 3
      %p257 = por %p255, %p256
      %p258 = scmp.ne.s32.totalorder %s250, %s253
      %p259 = scmp.eq.s32.totalorder %s25, 0
      %p260 = por %p258, %p259
      %p261 = scmp.ne.s32.totalorder %s250, %s253
      %p262 = scmp.eq.s32.totalorder %s30, 3
      %p263 = por %p261, %p262
      %p264 = scmp.ne.s32.totalorder %s253, %s254
      %p265 = scmp.eq.s32.totalorder %s30, 0
      %p266 = por %p264, %p265
      %p267 = scmp.ne.s32.totalorder %s253, %s254
      %p268 = scmp.eq.s32.totalorder %s31, 3
      %p269 = por %p267, %p268
      %p271 = scmp.ne.s32.totalorder %s254, %s270
      %p272 = scmp.eq.s32.totalorder %s31, 0
      %p273 = por %p271, %p272
      %s274 = ssub.s32 %s33, %s40
      %p275 = scmp.eq.s32.totalorder %s274, 0
      %s277 = sadd.s32 %s276, 1
      %s278 = scalar_select %p275, %s276, %s277
      %p281 = pneg %p275
      %p282 = scmp.eq.s32.totalorder %s25, 3
      %p283 = por %p281, %p282
      %p284 = scmp.ne.s32.totalorder %s276, %s279
      %p285 = scmp.eq.s32.totalorder %s25, 0
      %p286 = por %p284, %p285
      %p287 = scmp.ne.s32.totalorder %s276, %s279
      %p288 = scmp.eq.s32.totalorder %s30, 3
      %p289 = por %p287, %p288
      %p290 = scmp.ne.s32.totalorder %s279, %s280
      %p291 = scmp.eq.s32.totalorder %s30, 0
      %p292 = por %p290, %p291
      %p293 = scmp.ne.s32.totalorder %s279, %s280
      %p294 = scmp.eq.s32.totalorder %s31, 3
      %p295 = por %p293, %p294
      %p297 = scmp.ne.s32.totalorder %s280, %s296
      %p298 = scmp.eq.s32.totalorder %s31, 0
      %p299 = por %p297, %p298
      %s300 = ssub.s32 %s33, %s40
      %p301 = scmp.eq.s32.totalorder %s300, 0
      %s303 = sadd.s32 %s302, 1
      %s304 = scalar_select %p301, %s302, %s303
      %p307 = pneg %p301
      %p308 = scmp.eq.s32.totalorder %s25, 3
      %p309 = por %p307, %p308
      %p310 = scmp.ne.s32.totalorder %s302, %s305
      %p311 = scmp.eq.s32.totalorder %s25, 0
      %p312 = por %p310, %p311
      %p313 = scmp.ne.s32.totalorder %s302, %s305
      %p314 = scmp.eq.s32.totalorder %s30, 3
      %p315 = por %p313, %p314
      %p316 = scmp.ne.s32.totalorder %s305, %s306
      %p317 = scmp.eq.s32.totalorder %s30, 0
      %p318 = por %p316, %p317
      %p319 = scmp.ne.s32.totalorder %s305, %s306
      %p320 = scmp.eq.s32.totalorder %s31, 3
      %p321 = por %p319, %p320
      %p323 = scmp.ne.s32.totalorder %s306, %s322
      %p324 = scmp.eq.s32.totalorder %s31, 0
      %p325 = por %p323, %p324
      %s326 = ssub.s32 %s33, %s40
      %p327 = scmp.eq.s32.totalorder %s326, 0
      %s329 = sadd.s32 %s328, 1
      %s330 = scalar_select %p327, %s328, %s329
      %p333 = pneg %p327
      %p334 = scmp.eq.s32.totalorder %s25, 3
      %p335 = por %p333, %p334
      %p336 = scmp.ne.s32.totalorder %s328, %s331
      %p337 = scmp.eq.s32.totalorder %s25, 0
      %p338 = por %p336, %p337
      %p339 = scmp.ne.s32.totalorder %s328, %s331
      %p340 = scmp.eq.s32.totalorder %s30, 3
      %p341 = por %p339, %p340
      %p342 = scmp.ne.s32.totalorder %s331, %s332
      %p343 = scmp.eq.s32.totalorder %s30, 0
      %p344 = por %p342, %p343
      %p345 = scmp.ne.s32.totalorder %s331, %s332
      %p346 = scmp.eq.s32.totalorder %s31, 3
      %p347 = por %p345, %p346
      %p349 = scmp.ne.s32.totalorder %s332, %s348
      %p350 = scmp.eq.s32.totalorder %s31, 0
      %p351 = por %p349, %p350
      %s352 = ssub.s32 %s33, %s40
      %p353 = scmp.eq.s32.totalorder %s352, 0
      %s355 = sadd.s32 %s354, 1
      %s356 = scalar_select %p353, %s354, %s355
      %p359 = pneg %p353
      %p360 = scmp.eq.s32.totalorder %s25, 3
      %p361 = por %p359, %p360
      %p362 = scmp.ne.s32.totalorder %s354, %s357
      %p363 = scmp.eq.s32.totalorder %s25, 0
      %p364 = por %p362, %p363
      %p365 = scmp.ne.s32.totalorder %s354, %s357
      %p366 = scmp.eq.s32.totalorder %s30, 3
      %p367 = por %p365, %p366
      %p368 = scmp.ne.s32.totalorder %s357, %s358
      %p369 = scmp.eq.s32.totalorder %s30, 0
      %p370 = por %p368, %p369
      %p371 = scmp.ne.s32.totalorder %s357, %s358
      %p372 = scmp.eq.s32.totalorder %s31, 3
      %p373 = por %p371, %p372
      %p375 = scmp.ne.s32.totalorder %s358, %s374
      %p376 = scmp.eq.s32.totalorder %s31, 0
      %p377 = por %p375, %p376
      %s378 = ssub.s32 %s33, %s40
      %p379 = scmp.eq.s32.totalorder %s378, 0
      %s381 = sadd.s32 %s380, 1
      %s382 = scalar_select %p379, %s380, %s381
      %p385 = pneg %p379
      %p386 = scmp.eq.s32.totalorder %s25, 3
      %p387 = por %p385, %p386
      %p388 = scmp.ne.s32.totalorder %s380, %s383
      %p389 = scmp.eq.s32.totalorder %s25, 0
      %p390 = por %p388, %p389
      %p391 = scmp.ne.s32.totalorder %s380, %s383
      %p392 = scmp.eq.s32.totalorder %s30, 3
      %p393 = por %p391, %p392
      %p394 = scmp.ne.s32.totalorder %s383, %s384
      %p395 = scmp.eq.s32.totalorder %s30, 0
      %p396 = por %p394, %p395
      %p397 = scmp.ne.s32.totalorder %s383, %s384
      %p398 = scmp.eq.s32.totalorder %s31, 3
      %p399 = por %p397, %p398
      %p401 = scmp.ne.s32.totalorder %s384, %s400
      %p402 = scmp.eq.s32.totalorder %s31, 0
      %p403 = por %p401, %p402
      %s405 = sadd.s32 %s404, 1
      %p408 = scmp.eq.s32.totalorder %s25, 3
      %p409 = scmp.ne.s32.totalorder %s404, %s406
      %p410 = scmp.eq.s32.totalorder %s25, 0
      %p411 = por %p409, %p410
      %p412 = scmp.ne.s32.totalorder %s404, %s406
      %p413 = scmp.eq.s32.totalorder %s30, 3
      %p414 = por %p412, %p413
      %p415 = scmp.ne.s32.totalorder %s406, %s407
      %p416 = scmp.eq.s32.totalorder %s30, 0
      %p417 = por %p415, %p416
      %p418 = scmp.ne.s32.totalorder %s406, %s407
      %p419 = scmp.eq.s32.totalorder %s31, 3
      %p420 = por %p418, %p419
      %p422 = scmp.ne.s32.totalorder %s407, %s421
      %p423 = scmp.eq.s32.totalorder %s31, 0
      %p424 = por %p422, %p423
      %s426 = sadd.s32 %s425, 1
      %p429 = scmp.eq.s32.totalorder %s25, 3
      %p430 = scmp.ne.s32.totalorder %s425, %s427
      %p431 = scmp.eq.s32.totalorder %s25, 0
      %p432 = por %p430, %p431
      %p433 = scmp.ne.s32.totalorder %s425, %s427
      %p434 = scmp.eq.s32.totalorder %s30, 3
      %p435 = por %p433, %p434
      %p436 = scmp.ne.s32.totalorder %s427, %s428
      %p437 = scmp.eq.s32.totalorder %s30, 0
      %p438 = por %p436, %p437
      %p439 = scmp.ne.s32.totalorder %s427, %s428
      %p440 = scmp.eq.s32.totalorder %s31, 3
      %p441 = por %p439, %p440
      %p443 = scmp.ne.s32.totalorder %s428, %s442
      %p444 = scmp.eq.s32.totalorder %s31, 0
      %p445 = por %p443, %p444
      %s446 = ssub.s32 %s32, %s44
      %p447 = scmp.eq.s32.totalorder %s446, 0
      %s449 = sadd.s32 %s448, 1
      %s450 = scalar_select %p447, %s448, %s449
      %p453 = pneg %p447
      %p454 = scmp.eq.s32.totalorder %s25, 3
      %p455 = por %p453, %p454
      %p456 = scmp.ne.s32.totalorder %s448, %s451
      %p457 = scmp.eq.s32.totalorder %s25, 0
      %p458 = por %p456, %p457
      %p459 = scmp.ne.s32.totalorder %s448, %s451
      %p460 = scmp.eq.s32.totalorder %s30, 3
      %p461 = por %p459, %p460
      %p462 = scmp.ne.s32.totalorder %s451, %s452
      %p463 = scmp.eq.s32.totalorder %s30, 0
      %p464 = por %p462, %p463
      %p465 = scmp.ne.s32.totalorder %s451, %s452
      %p466 = scmp.eq.s32.totalorder %s31, 3
      %p467 = por %p465, %p466
      %p469 = scmp.ne.s32.totalorder %s452, %s468
      %p470 = scmp.eq.s32.totalorder %s31, 0
      %p471 = por %p469, %p470
      %p472 = scmp.le.s32.totalorder 1, %s25
      %p473 = scmp.lt.s32.totalorder %s25, 5
      %p474 = pnand %p472, %p473
      %p475 = pneg %p474
      // Predicated region
      $region9: #{_lambda_.1} parent=5 // pred_check
        _
      $region10: #{_lambda_.1} parent=5 // pred_check_branch
        %477 = sbr.rel (%p474) target = $region12
      $region11: #{_lambda_.1} parent=5 // pred_region
        %s478 = ssub.s32 %s25, 1
        // Predicated region
        $region13: #{_lambda_.1} parent=11 // pred_check
          %p479 = pneg %p84
        $region14: #{_lambda_.1} parent=11 // pred_check_branch
          %481 = sbr.rel (%p479) target = $region16
        $region15: #{_lambda_.1} parent=11 // pred_region
          _
        $region16: #{_lambda_.1} parent=11 // pred_fallthru
          _
        // Predicated region
        $region17: #{_lambda_.1} parent=11 // pred_check
          %p482 = pneg %p417
        $region18: #{_lambda_.1} parent=11 // pred_check_branch
          %484 = sbr.rel (%p482) target = $region20
        $region19: #{_lambda_.1} parent=11 // pred_region
          _
        $region20: #{_lambda_.1} parent=11 // pred_fallthru
          _
        // Predicated region
        $region21: #{_lambda_.1} parent=11 // pred_check
          %p485 = pneg %p438
        $region22: #{_lambda_.1} parent=11 // pred_check_branch
          %487 = sbr.rel (%p485) target = $region24
        $region23: #{_lambda_.1} parent=11 // pred_region
          _
        $region24: #{_lambda_.1} parent=11 // pred_fallthru
          _
      $region12: #{_lambda_.1} parent=5 // pred_fallthru
        _
      %p488 = scmp.lt.s32.totalorder %s25, 4
      // Predicated region
      $region25: #{_lambda_.1} parent=5 // pred_check
        %p489 = pneg %p488
      $region26: #{_lambda_.1} parent=5 // pred_check_branch
        %491 = sbr.rel (%p489) target = $region28
      $region27: #{_lambda_.1} parent=5 // pred_region
        // Predicated region
        $region29: #{_lambda_.1} parent=27 // pred_check
          %p492 = pneg %p57
        $region30: #{_lambda_.1} parent=27 // pred_check_branch
          %494 = sbr.rel (%p492) target = $region32
        $region31: #{_lambda_.1} parent=27 // pred_region
          %p495 = scmp.lt.s32.totalorder %s32, 1
          %s496 = scalar_select %p495, %s32, 1
          %s497 = smul.addr %s496, 8
          %s498 = scalar_lea.vmem %s0, %s497
        $region32: #{_lambda_.1} parent=27 // pred_fallthru
          _
        // Predicated region
        $region33: #{_lambda_.1} parent=27 // pred_check
          %p499 = pneg %p104
        $region34: #{_lambda_.1} parent=27 // pred_check_branch
          %501 = sbr.rel (%p499) target = $region36
        $region35: #{_lambda_.1} parent=27 // pred_region
          %p502 = scmp.lt.s32.totalorder %s33, 1
          %s503 = scalar_select %p502, %s33, 1
          %s504 = scalar_lea.vmem %s2, %s503
        $region36: #{_lambda_.1} parent=27 // pred_fallthru
          _
        // Predicated region
        $region37: #{_lambda_.1} parent=27 // pred_check
          %p505 = pneg %p130
        $region38: #{_lambda_.1} parent=27 // pred_check_branch
          %507 = sbr.rel (%p505) target = $region40
        $region39: #{_lambda_.1} parent=27 // pred_region
          %p508 = scmp.lt.s32.totalorder %s33, 1
          %s509 = scalar_select %p508, %s33, 1
          %s510 = scalar_lea.vmem %s3, %s509
        $region40: #{_lambda_.1} parent=27 // pred_fallthru
          _
        // Predicated region
        $region41: #{_lambda_.1} parent=27 // pred_check
          %p511 = pneg %p156
        $region42: #{_lambda_.1} parent=27 // pred_check_branch
          %513 = sbr.rel (%p511) target = $region44
        $region43: #{_lambda_.1} parent=27 // pred_region
          %p514 = scmp.lt.s32.totalorder %s33, 1
          %s515 = scalar_select %p514, %s33, 1
          %s516 = smul.addr %s515, 4
          %s517 = smul.addr %s516, 4
          %s518 = scalar_lea.vmem %s4, %s517
        $region44: #{_lambda_.1} parent=27 // pred_fallthru
          _
        // Predicated region
        $region45: #{_lambda_.1} parent=27 // pred_check
          %p519 = pneg %p182
        $region46: #{_lambda_.1} parent=27 // pred_check_branch
          %521 = sbr.rel (%p519) target = $region48
        $region47: #{_lambda_.1} parent=27 // pred_region
          %p522 = scmp.lt.s32.totalorder %s33, 1
          %s523 = scalar_select %p522, %s33, 1
          %s524 = scalar_lea.vmem %s5, %s523
        $region48: #{_lambda_.1} parent=27 // pred_fallthru
          _
        // Predicated region
        $region49: #{_lambda_.1} parent=27 // pred_check
          %p525 = pneg %p208
        $region50: #{_lambda_.1} parent=27 // pred_check_branch
          %527 = sbr.rel (%p525) target = $region52
        $region51: #{_lambda_.1} parent=27 // pred_region
          %p528 = scmp.lt.s32.totalorder %s33, 1
          %s529 = scalar_select %p528, %s33, 1
          %s530 = smul.addr %s529, 4
          %s531 = smul.addr %s530, 4
          %s532 = scalar_lea.vmem %s6, %s531
        $region52: #{_lambda_.1} parent=27 // pred_fallthru
          _
        // Predicated region
        $region53: #{_lambda_.1} parent=27 // pred_check
          %p533 = pneg %p234
        $region54: #{_lambda_.1} parent=27 // pred_check_branch
          %535 = sbr.rel (%p533) target = $region56
        $region55: #{_lambda_.1} parent=27 // pred_region
          %p536 = scmp.lt.s32.totalorder %s33, 1
          %s537 = scalar_select %p536, %s33, 1
          %s538 = scalar_lea.vmem %s7, %s537
        $region56: #{_lambda_.1} parent=27 // pred_fallthru
          _
        // Predicated region
        $region57: #{_lambda_.1} parent=27 // pred_check
          %p539 = pneg %p260
        $region58: #{_lambda_.1} parent=27 // pred_check_branch
          %541 = sbr.rel (%p539) target = $region60
        $region59: #{_lambda_.1} parent=27 // pred_region
          %p542 = scmp.lt.s32.totalorder %s33, 1
          %s543 = scalar_select %p542, %s33, 1
          %s544 = scalar_lea.vmem %s8, %s543
        $region60: #{_lambda_.1} parent=27 // pred_fallthru
          _
        // Predicated region
        $region61: #{_lambda_.1} parent=27 // pred_check
          %p545 = pneg %p286
        $region62: #{_lambda_.1} parent=27 // pred_check_branch
          %547 = sbr.rel (%p545) target = $region64
        $region63: #{_lambda_.1} parent=27 // pred_region
          %p548 = scmp.lt.s32.totalorder %s33, 1
          %s549 = scalar_select %p548, %s33, 1
          %s550 = scalar_lea.vmem %s9, %s549
        $region64: #{_lambda_.1} parent=27 // pred_fallthru
          _
        // Predicated region
        $region65: #{_lambda_.1} parent=27 // pred_check
          %p551 = pneg %p312
        $region66: #{_lambda_.1} parent=27 // pred_check_branch
          %553 = sbr.rel (%p551) target = $region68
        $region67: #{_lambda_.1} parent=27 // pred_region
          %p554 = scmp.lt.s32.totalorder %s33, 1
          %s555 = scalar_select %p554, %s33, 1
          %s556 = smul.addr %s555, 4
          %s557 = smul.addr %s556, 4
          %s558 = scalar_lea.vmem %s10, %s557
        $region68: #{_lambda_.1} parent=27 // pred_fallthru
          _
        // Predicated region
        $region69: #{_lambda_.1} parent=27 // pred_check
          %p559 = pneg %p338
        $region70: #{_lambda_.1} parent=27 // pred_check_branch
          %561 = sbr.rel (%p559) target = $region72
        $region71: #{_lambda_.1} parent=27 // pred_region
          %p562 = scmp.lt.s32.totalorder %s33, 1
          %s563 = scalar_select %p562, %s33, 1
          %s564 = scalar_lea.vmem %s11, %s563
        $region72: #{_lambda_.1} parent=27 // pred_fallthru
          _
        // Predicated region
        $region73: #{_lambda_.1} parent=27 // pred_check
          %p565 = pneg %p364
        $region74: #{_lambda_.1} parent=27 // pred_check_branch
          %567 = sbr.rel (%p565) target = $region76
        $region75: #{_lambda_.1} parent=27 // pred_region
          %p568 = scmp.lt.s32.totalorder %s33, 1
          %s569 = scalar_select %p568, %s33, 1
          %s570 = smul.addr %s569, 8
          %s571 = smul.addr %s570, 4
          %s572 = scalar_lea.vmem %s12, %s571
        $region76: #{_lambda_.1} parent=27 // pred_fallthru
          _
        // Predicated region
        $region77: #{_lambda_.1} parent=27 // pred_check
          %p573 = pneg %p390
        $region78: #{_lambda_.1} parent=27 // pred_check_branch
          %575 = sbr.rel (%p573) target = $region80
        $region79: #{_lambda_.1} parent=27 // pred_region
          %p576 = scmp.lt.s32.totalorder %s33, 1
          %s577 = scalar_select %p576, %s33, 1
          %s578 = scalar_lea.vmem %s13, %s577
        $region80: #{_lambda_.1} parent=27 // pred_fallthru
          _
      $region28: #{_lambda_.1} parent=5 // pred_fallthru
        _
      %p579 = scmp.le.s32.totalorder 1, %s25
      %p580 = scmp.lt.s32.totalorder %s25, 5
      %p581 = pnand %p579, %p580
      %p582 = pneg %p581
      // Predicated region
      $region81: #{_lambda_.1} parent=5 // pred_check
        _
      $region82: #{_lambda_.1} parent=5 // pred_check_branch
        %584 = sbr.rel (%p581) target = $region84
      $region83: #{_lambda_.1} parent=5 // pred_region
        %s585 = ssub.s32 %s25, 1
        %p586 = scmp.lt.s32.totalorder %s34, 1
        %s587 = scalar_select %p586, %s34, 1
        %s588 = smul.addr %s587, 8
        %s589 = scalar_lea.vmem %s0, %s588
        %p590 = pneg %p63
        %p591 = pneg %p60
        %p592 = pneg %p84
        %p593 = pneg %p81
        %p594 = scmp.lt.s32.totalorder %s35, 1
        %s595 = scalar_select %p594, %s35, 1
        %s596 = scalar_lea.vmem %s2, %s595
        %p597 = pneg %p110
        %p598 = pneg %p107
        %p599 = scmp.lt.s32.totalorder %s35, 1
        %s600 = scalar_select %p599, %s35, 1
        %s601 = scalar_lea.vmem %s3, %s600
        %p602 = pneg %p136
        %p603 = pneg %p133
        %p604 = scmp.lt.s32.totalorder %s35, 1
        %s605 = scalar_select %p604, %s35, 1
        %s606 = smul.addr %s605, 4
        %s607 = smul.addr %s606, 4
        %s608 = scalar_lea.vmem %s4, %s607
        %p609 = pneg %p162
        %p610 = pneg %p159
        %p611 = scmp.lt.s32.totalorder %s35, 1
        %s612 = scalar_select %p611, %s35, 1
        %s613 = scalar_lea.vmem %s5, %s612
        %p614 = pneg %p188
        %p615 = pneg %p185
        %p616 = scmp.lt.s32.totalorder %s35, 1
        %s617 = scalar_select %p616, %s35, 1
        %s618 = smul.addr %s617, 4
        %s619 = smul.addr %s618, 4
        %s620 = scalar_lea.vmem %s6, %s619
        %p621 = pneg %p214
        %p622 = pneg %p211
        %p623 = scmp.lt.s32.totalorder %s35, 1
        %s624 = scalar_select %p623, %s35, 1
        %s625 = scalar_lea.vmem %s7, %s624
        %p626 = pneg %p240
        %p627 = pneg %p237
        %p628 = scmp.lt.s32.totalorder %s35, 1
        %s629 = scalar_select %p628, %s35, 1
        %s630 = scalar_lea.vmem %s8, %s629
        %p631 = pneg %p266
        %p632 = pneg %p263
        %p633 = scmp.lt.s32.totalorder %s35, 1
        %s634 = scalar_select %p633, %s35, 1
        %s635 = scalar_lea.vmem %s9, %s634
        %p636 = pneg %p292
        %p637 = pneg %p289
        %p638 = scmp.lt.s32.totalorder %s35, 1
        %s639 = scalar_select %p638, %s35, 1
        %s640 = smul.addr %s639, 4
        %s641 = smul.addr %s640, 4
        %s642 = scalar_lea.vmem %s10, %s641
        %p643 = pneg %p318
        %p644 = pneg %p315
        %p645 = scmp.lt.s32.totalorder %s35, 1
        %s646 = scalar_select %p645, %s35, 1
        %s647 = scalar_lea.vmem %s11, %s646
        %p648 = pneg %p344
        %p649 = pneg %p341
        %p650 = scmp.lt.s32.totalorder %s35, 1
        %s651 = scalar_select %p650, %s35, 1
        %s652 = smul.addr %s651, 8
        %s653 = smul.addr %s652, 4
        %s654 = scalar_lea.vmem %s12, %s653
        %p655 = pneg %p370
        %p656 = pneg %p367
        %p657 = scmp.lt.s32.totalorder %s35, 1
        %s658 = scalar_select %p657, %s35, 1
        %s659 = scalar_lea.vmem %s13, %s658
        %p660 = pneg %p396
        %p661 = pneg %p393
        %p662 = pneg %p417
        %p663 = pneg %p414
        %p664 = pneg %p438
        %p665 = pneg %p435
        %p666 = pneg %p464
        %p667 = pneg %p461
        %s668 = sand.u32 %s451, 1
        %s669 = scalar_lea.sflag [#allocation4], %s668
        %s670 = sand.u32 %s451, 1
        %s671 = smul.addr %s670, 8
        %s672 = scalar_lea.vmem [#allocation3], %s671
        %p673 = scmp.lt.s32.totalorder %s34, 1
        %s674 = scalar_select %p673, %s34, 1
        %s675 = smul.addr %s674, 8
        %s676 = scalar_lea.vmem %s0, %s675
        %p677 = scmp.lt.s32.totalorder %s35, 1
        %s678 = scalar_select %p677, %s35, 1
        %s679 = scalar_lea.vmem %s2, %s678
        %p680 = scmp.lt.s32.totalorder %s35, 1
        %s681 = scalar_select %p680, %s35, 1
        %s682 = scalar_lea.vmem %s3, %s681
        %p683 = scmp.lt.s32.totalorder %s35, 1
        %s684 = scalar_select %p683, %s35, 1
        %s685 = smul.addr %s684, 4
        %s686 = smul.addr %s685, 4
        %s687 = scalar_lea.vmem %s4, %s686
        %p688 = scmp.lt.s32.totalorder %s35, 1
        %s689 = scalar_select %p688, %s35, 1
        %s690 = scalar_lea.vmem %s5, %s689
        %p691 = scmp.lt.s32.totalorder %s35, 1
        %s692 = scalar_select %p691, %s35, 1
        %s693 = smul.addr %s692, 4
        %s694 = smul.addr %s693, 4
        %s695 = scalar_lea.vmem %s6, %s694
        %p696 = scmp.lt.s32.totalorder %s35, 1
        %s697 = scalar_select %p696, %s35, 1
        %s698 = scalar_lea.vmem %s7, %s697
        %p699 = scmp.lt.s32.totalorder %s35, 1
        %s700 = scalar_select %p699, %s35, 1
        %s701 = scalar_lea.vmem %s8, %s700
        %p702 = scmp.lt.s32.totalorder %s35, 1
        %s703 = scalar_select %p702, %s35, 1
        %s704 = scalar_lea.vmem %s9, %s703
        %p705 = scmp.lt.s32.totalorder %s35, 1
        %s706 = scalar_select %p705, %s35, 1
        %s707 = smul.addr %s706, 4
        %s708 = smul.addr %s707, 4
        %s709 = scalar_lea.vmem %s10, %s708
        %p710 = scmp.lt.s32.totalorder %s35, 1
        %s711 = scalar_select %p710, %s35, 1
        %s712 = scalar_lea.vmem %s11, %s711
        %p713 = scmp.lt.s32.totalorder %s35, 1
        %s714 = scalar_select %p713, %s35, 1
        %s715 = smul.addr %s714, 8
        %s716 = smul.addr %s715, 4
        %s717 = scalar_lea.vmem %s12, %s716
        %p718 = scmp.lt.s32.totalorder %s35, 1
        %s719 = scalar_select %p718, %s35, 1
        %s720 = scalar_lea.vmem %s13, %s719
        %p722 = scmp.eq.s32.totalorder %s35, 0
        // Predicated region
        $region85: #{_lambda_.1} parent=83 // pred_check
          %p723 = pneg %p722
        $region86: #{_lambda_.1} parent=83 // pred_check_branch
          %725 = sbr.rel (%p723) target = $region88
        $region87: #{_lambda_.1} parent=83 // pred_region
          %v726 = vld [vmem:[%s676] sm:$0xff]
          %v727 = vmul.f32 %v726, 5.656854
          %v728 = vld [vmem:[%s1] sm:$0xff]
          %v729 = vadd.f32 %v727, %v728
          %vm730 = vcmask 261120
          %731 = vst.msk [vmem:[%s672] sm:$0xff] %vm730, %v729
        $region88: #{_lambda_.1} parent=83 // pred_fallthru
          _
        %v732 = vld [vmem:[%s672] sm:$0xff]
        %v733 = vld [vmem:[%s679] sm:$0x1]
        %v734 = vld [vmem:[%s682] sm:$0x1]
        %vm735 = vcmask 261120
        %v736 = vsel %vm735, %v732, 0.0
        %737 = vadd.xlane.f32.xlu0 %v736
        %v738 = vpop.xlane.xlu0 %737
        %v739 = vrcp.pop 32.0
        %v740 = vmul.f32 %v738, %v739
        %v741 = vsub.f32 %v732, %v740
        %v742 = vmul.f32 %v741, %v741
        %v743 = vsel %vm735, %v742, 0.0
        %744 = vadd.xlane.f32.xlu0 %v743
        %v745 = vpop.xlane.xlu0 %744
        %v746 = vmul.f32 %v745, 0.032258064
        %v747 = vrsqrt.pop %v746
        %v748 = vmul.f32 %v746, %v747
        %vm749 = vcmp.eq.f32.partialorder %v746, inf
        %v750 = vsel %vm749, %v746, %v748
        %vm751 = vcmp.eq.f32.partialorder %v746, 0.0
        %v752 = vand.u32 %v746, 2147483648
        %v753 = vsel %vm751, %v752, %v750
        %v754 = vadd.f32 %v753, 1e-06
        %v755 = vrcp.pop %v754
        %v757 = vlaneseq
        %v758 = vshrl.u32 %v757, 7
        %v759 = vsub.s32 0, %v758
        %v760 = vrot.slane %v733, %v759
        %v762 = vmul.f32 %v760, %v741
        %v763 = vmul.f32 %v762, %v755
        %v765 = vlaneseq
        %v766 = vshrl.u32 %v765, 7
        %v767 = vsub.s32 0, %v766
        %v768 = vrot.slane %v734, %v767
        %v770 = vadd.f32 %v763, %v768
        %v771 = vld [vmem:[%s687] sm:$0xf]
        %v772 = vld [vmem:[%s687 + $0x4] sm:$0xf]
        %v773 = vld [vmem:[%s687 + $0x8] sm:$0xf]
        %v774 = vld [vmem:[%s687 + $0xc] sm:$0xf]
        %v775 = vpack.c.bf16 %v770, %v770
        %v776 = vld [vmem:[%s690] sm:$0x1]
        %v778 = vlaneseq
        %v779 = vshrl.u32 %v778, 7
        %v780 = vsub.s32 0, %v779
        %v781 = vrot.slane %v776, %v780
        %v787 = vunpack.c.l.b16 %v771
        %v788 = vunpack.c.l.b16 %v772
        %v789 = vunpack.c.l.b16 %v773
        %v790 = vunpack.c.l.b16 %v774
        %v791 = vpack.c.b16 %v788, %v787
        %v792 = vpack.c.b16 %v790, %v789
        %v796 = vsel %vm735, %v775, 0
        %798 = vmatprep.subr.bf16.mxu0 0
        %799 = vmatpush1.bf16.msra.mxu0 %v791
        %800 = vmatprep.subr.bf16.mxu0 0
        %801 = vmatpush1.bf16.msra.mxu0 %v792
        %802 = vmatprep.subr.bf16.mxu0 0
        %803 = vmatpush1.bf16.msra.mxu0 0
        %804 = vmatprep.subr.bf16.mxu0 0
        %805 = vmatpush1.bf16.msra.mxu0 0
        %806 = vmatprep.subr.bf16.mxu0 0
        %807 = vmatpush1.bf16.msra.mxu0 0
        %808 = vmatprep.subr.bf16.mxu0 0
        %809 = vmatpush1.bf16.msra.mxu0 0
        %810 = vmatprep.subr.bf16.mxu0 0
        %811 = vmatpush1.bf16.msra.mxu0 0
        %812 = vmatprep.subr.bf16.mxu0 0
        %813 = vmatpush1.bf16.msra.mxu0 0
        %814 = vmatprep.subr.bf16.mxu0 0
        %815 = vmatpush1.bf16.msra.mxu0 0
        %816 = vmatprep.subr.bf16.mxu0 0
        %817 = vmatpush1.bf16.msra.mxu0 0
        %818 = vmatprep.subr.bf16.mxu0 0
        %819 = vmatpush1.bf16.msra.mxu0 0
        %820 = vmatprep.subr.bf16.mxu0 0
        %821 = vmatpush1.bf16.msra.mxu0 0
        %822 = vmatprep.subr.bf16.mxu0 0
        %823 = vmatpush1.bf16.msra.mxu0 0
        %824 = vmatprep.subr.bf16.mxu0 0
        %825 = vmatpush1.bf16.msra.mxu0 0
        %826 = vmatprep.subr.bf16.mxu0 0
        %827 = vmatpush1.bf16.msra.mxu0 0
        %828 = vmatprep.subr.bf16.mxu0 0
        %829 = vmatpush1.bf16.msra.mxu0 0
        %830 = vmatprep.mubr.bf16.mxu0 0
        %831 = vmatmul.mubr.bf16.gmra.mrb[0].mxu0 %v796
        %v832 = vpop.f32.mrb[0].mxu0
        %v833 = vadd.f32 %v781, %v832
        %v834 = vpop.f32.mrb[0].mxu0
        %v835 = vpop.f32.mrb[0].mxu0
        %v836 = vpop.f32.mrb[0].mxu0
        %837 = vdwg.mxu0
        %v838 = vpack.c.bf16 %v833, %v833
        %840 = vrot.lane.b32.xlu0 %v838, 96
        %v841 = vpop.permute.xlu0 %840
        %vm842 = vcmask 64512
        %v844 = vsel %vm842, %v838, 0
        %v847 = vsel %vm842, %v841, 0
        %849 = vmatprep.subr.bf16.mxu0 0
        %850 = vmatpush1.bf16.xpose.msra.mxu0 %v847
        %851 = vmatprep.subr.bf16.mxu0 0
        %852 = vmatpush1.bf16.xpose.msra.mxu0 0
        %853 = vmatprep.subr.bf16.mxu0 0
        %854 = vmatpush1.bf16.xpose.msra.mxu0 0
        %855 = vmatprep.subr.bf16.mxu0 0
        %856 = vmatpush1.bf16.xpose.msra.mxu0 0
        %857 = vmatprep.subr.bf16.mxu0 0
        %858 = vmatpush1.bf16.xpose.msra.mxu0 0
        %859 = vmatprep.subr.bf16.mxu0 0
        %860 = vmatpush1.bf16.xpose.msra.mxu0 0
        %861 = vmatprep.subr.bf16.mxu0 0
        %862 = vmatpush1.bf16.xpose.msra.mxu0 0
        %863 = vmatprep.subr.bf16.mxu0 0
        %864 = vmatpush1.bf16.xpose.msra.mxu0 0
        %865 = vmatprep.subr.bf16.mxu0 0
        %866 = vmatpush1.bf16.xpose.msra.mxu0 0
        %867 = vmatprep.subr.bf16.mxu0 0
        %868 = vmatpush1.bf16.xpose.msra.mxu0 0
        %869 = vmatprep.subr.bf16.mxu0 0
        %870 = vmatpush1.bf16.xpose.msra.mxu0 0
        %871 = vmatprep.subr.bf16.mxu0 0
        %872 = vmatpush1.bf16.xpose.msra.mxu0 0
        %873 = vmatprep.subr.bf16.mxu0 0
        %874 = vmatpush1.bf16.xpose.msra.mxu0 0
        %875 = vmatprep.subr.bf16.mxu0 0
        %876 = vmatpush1.bf16.xpose.msra.mxu0 0
        %877 = vmatprep.subr.bf16.mxu0 0
        %878 = vmatpush1.bf16.xpose.msra.mxu0 0
        %879 = vmatprep.subr.bf16.mxu0 0
        %880 = vmatpush1.bf16.xpose.msra.mxu0 0
        %881 = vmatprep.mubr.bf16.mxu0 0
        %882 = vmatmul.mubr.bf16.gmra.mrb[0].mxu0 %v844
        %v883 = vpop.f32.mrb[0].mxu0
        %v884 = vadd.f32 0.0, %v883
        %v885 = vpop.f32.mrb[0].mxu0
        %v886 = vpop.f32.mrb[0].mxu0
        %v887 = vpop.f32.mrb[0].mxu0
        %888 = vdwg.mxu0
        %v889 = vmul.f32 %v884, 0.35355338
        %v890 = vsel %vm842, %v889, -inf
        %891 = vmax.xlane.f32.xlu0 %v890
        %v892 = vpop.xlane.xlu0 %891
        %v893 = vsub.f32 %v889, %v892
        %v894 = vmul.f32 %v893, 1.442695
        %v895 = vpow.pop %v894
        %v896 = vsel %vm842, %v895, 0.0
        %897 = vadd.xlane.f32.xlu0 %v896
        %v898 = vpop.xlane.xlu0 %897
        %v899 = vrcp.pop %v898
        %v900 = vmul.f32 %v895, %v899
        %v901 = vpack.c.bf16 %v900, %v900
        %902 = vrot.lane.b32.xlu0 %v838, 64
        %v903 = vpop.permute.xlu0 %902
        %v905 = vsel %vm842, %v901, 0
        %vm907 = vcmask 1043456
        %v909 = vsel %vm907, %v903, 0
        %911 = vmatprep.subr.bf16.mxu0 0
        %912 = vmatpush1.bf16.msra.mxu0 %v909
        %913 = vmatprep.subr.bf16.mxu0 0
        %914 = vmatpush1.bf16.msra.mxu0 0
        %915 = vmatprep.subr.bf16.mxu0 0
        %916 = vmatpush1.bf16.msra.mxu0 0
        %917 = vmatprep.subr.bf16.mxu0 0
        %918 = vmatpush1.bf16.msra.mxu0 0
        %919 = vmatprep.subr.bf16.mxu0 0
        %920 = vmatpush1.bf16.msra.mxu0 0
        %921 = vmatprep.subr.bf16.mxu0 0
        %922 = vmatpush1.bf16.msra.mxu0 0
        %923 = vmatprep.subr.bf16.mxu0 0
        %924 = vmatpush1.bf16.msra.mxu0 0
        %925 = vmatprep.subr.bf16.mxu0 0
        %926 = vmatpush1.bf16.msra.mxu0 0
        %927 = vmatprep.subr.bf16.mxu0 0
        %928 = vmatpush1.bf16.msra.mxu0 0
        %929 = vmatprep.subr.bf16.mxu0 0
        %930 = vmatpush1.bf16.msra.mxu0 0
        %931 = vmatprep.subr.bf16.mxu0 0
        %932 = vmatpush1.bf16.msra.mxu0 0
        %933 = vmatprep.subr.bf16.mxu0 0
        %934 = vmatpush1.bf16.msra.mxu0 0
        %935 = vmatprep.subr.bf16.mxu0 0
        %936 = vmatpush1.bf16.msra.mxu0 0
        %937 = vmatprep.subr.bf16.mxu0 0
        %938 = vmatpush1.bf16.msra.mxu0 0
        %939 = vmatprep.subr.bf16.mxu0 0
        %940 = vmatpush1.bf16.msra.mxu0 0
        %941 = vmatprep.subr.bf16.mxu0 0
        %942 = vmatpush1.bf16.msra.mxu0 0
        %943 = vmatprep.mubr.bf16.mxu0 0
        %944 = vmatmul.mubr.bf16.gmra.mrb[0].mxu0 %v905
        %v945 = vpop.f32.mrb[0].mxu0
        %v946 = vadd.f32 0.0, %v945
        %v947 = vpop.f32.mrb[0].mxu0
        %v948 = vpop.f32.mrb[0].mxu0
        %v949 = vpop.f32.mrb[0].mxu0
        %950 = vdwg.mxu0
        %951 = vst.msk [vmem:[#allocation2] sm:$0xff] %vm842, %v946
        %952 = vrot.lane.b32.xlu0 %v838, 120
        %v953 = vpop.permute.xlu0 %952
        %954 = vrot.lane.b32.xlu0 %v838, 88
        %v955 = vpop.permute.xlu0 %954
        %v957 = vsel %vm842, %v953, 0
        %v960 = vsel %vm842, %v955, 0
        %962 = vmatprep.subr.bf16.mxu0 0
        %963 = vmatpush1.bf16.xpose.msra.mxu0 %v960
        %964 = vmatprep.subr.bf16.mxu0 0
        %965 = vmatpush1.bf16.xpose.msra.mxu0 0
        %966 = vmatprep.subr.bf16.mxu0 0
        %967 = vmatpush1.bf16.xpose.msra.mxu0 0
        %968 = vmatprep.subr.bf16.mxu0 0
        %969 = vmatpush1.bf16.xpose.msra.mxu0 0
        %970 = vmatprep.subr.bf16.mxu0 0
        %971 = vmatpush1.bf16.xpose.msra.mxu0 0
        %972 = vmatprep.subr.bf16.mxu0 0
        %973 = vmatpush1.bf16.xpose.msra.mxu0 0
        %974 = vmatprep.subr.bf16.mxu0 0
        %975 = vmatpush1.bf16.xpose.msra.mxu0 0
        %976 = vmatprep.subr.bf16.mxu0 0
        %977 = vmatpush1.bf16.xpose.msra.mxu0 0
        %978 = vmatprep.subr.bf16.mxu0 0
        %979 = vmatpush1.bf16.xpose.msra.mxu0 0
        %980 = vmatprep.subr.bf16.mxu0 0
        %981 = vmatpush1.bf16.xpose.msra.mxu0 0
        %982 = vmatprep.subr.bf16.mxu0 0
        %983 = vmatpush1.bf16.xpose.msra.mxu0 0
        %984 = vmatprep.subr.bf16.mxu0 0
        %985 = vmatpush1.bf16.xpose.msra.mxu0 0
        %986 = vmatprep.subr.bf16.mxu0 0
        %987 = vmatpush1.bf16.xpose.msra.mxu0 0
        %988 = vmatprep.subr.bf16.mxu0 0
        %989 = vmatpush1.bf16.xpose.msra.mxu0 0
        %990 = vmatprep.subr.bf16.mxu0 0
        %991 = vmatpush1.bf16.xpose.msra.mxu0 0
        %992 = vmatprep.subr.bf16.mxu0 0
        %993 = vmatpush1.bf16.xpose.msra.mxu0 0
        %994 = vmatprep.mubr.bf16.mxu0 0
        %995 = vmatmul.mubr.bf16.gmra.mrb[0].mxu0 %v957
        %v996 = vpop.f32.mrb[0].mxu0
        %v997 = vadd.f32 0.0, %v996
        %v998 = vpop.f32.mrb[0].mxu0
        %v999 = vpop.f32.mrb[0].mxu0
        %v1000 = vpop.f32.mrb[0].mxu0
        %1001 = vdwg.mxu0
        %v1002 = vmul.f32 %v997, 0.35355338
        %v1003 = vsel %vm842, %v1002, -inf
        %1004 = vmax.xlane.f32.xlu0 %v1003
        %v1005 = vpop.xlane.xlu0 %1004
        %v1006 = vsub.f32 %v1002, %v1005
        %v1007 = vmul.f32 %v1006, 1.442695
        %v1008 = vpow.pop %v1007
        %v1009 = vsel %vm842, %v1008, 0.0
        %1010 = vadd.xlane.f32.xlu0 %v1009
        %v1011 = vpop.xlane.xlu0 %1010
        %v1012 = vrcp.pop %v1011
        %v1013 = vmul.f32 %v1008, %v1012
        %v1014 = vpack.c.bf16 %v1013, %v1013
        %1015 = vrot.lane.b32.xlu0 %v838, 56
        %v1016 = vpop.permute.xlu0 %1015
        %v1018 = vsel %vm842, %v1014, 0
        %v1021 = vsel %vm907, %v1016, 0
        %1023 = vmatprep.subr.bf16.mxu0 0
        %1024 = vmatpush1.bf16.msra.mxu0 %v1021
        %1025 = vmatprep.subr.bf16.mxu0 0
        %1026 = vmatpush1.bf16.msra.mxu0 0
        %1027 = vmatprep.subr.bf16.mxu0 0
        %1028 = vmatpush1.bf16.msra.mxu0 0
        %1029 = vmatprep.subr.bf16.mxu0 0
        %1030 = vmatpush1.bf16.msra.mxu0 0
        %1031 = vmatprep.subr.bf16.mxu0 0
        %1032 = vmatpush1.bf16.msra.mxu0 0
        %1033 = vmatprep.subr.bf16.mxu0 0
        %1034 = vmatpush1.bf16.msra.mxu0 0
        %1035 = vmatprep.subr.bf16.mxu0 0
        %1036 = vmatpush1.bf16.msra.mxu0 0
        %1037 = vmatprep.subr.bf16.mxu0 0
        %1038 = vmatpush1.bf16.msra.mxu0 0
        %1039 = vmatprep.subr.bf16.mxu0 0
        %1040 = vmatpush1.bf16.msra.mxu0 0
        %1041 = vmatprep.subr.bf16.mxu0 0
        %1042 = vmatpush1.bf16.msra.mxu0 0
        %1043 = vmatprep.subr.bf16.mxu0 0
        %1044 = vmatpush1.bf16.msra.mxu0 0
        %1045 = vmatprep.subr.bf16.mxu0 0
        %1046 = vmatpush1.bf16.msra.mxu0 0
        %1047 = vmatprep.subr.bf16.mxu0 0
        %1048 = vmatpush1.bf16.msra.mxu0 0
        %1049 = vmatprep.subr.bf16.mxu0 0
        %1050 = vmatpush1.bf16.msra.mxu0 0
        %1051 = vmatprep.subr.bf16.mxu0 0
        %1052 = vmatpush1.bf16.msra.mxu0 0
        %1053 = vmatprep.subr.bf16.mxu0 0
        %1054 = vmatpush1.bf16.msra.mxu0 0
        %1055 = vmatprep.mubr.bf16.mxu0 0
        %1056 = vmatmul.mubr.bf16.gmra.mrb[0].mxu0 %v1018
        %v1057 = vpop.f32.mrb[0].mxu0
        %v1058 = vadd.f32 0.0, %v1057
        %v1059 = vpop.f32.mrb[0].mxu0
        %v1060 = vpop.f32.mrb[0].mxu0
        %v1061 = vpop.f32.mrb[0].mxu0
        %1062 = vdwg.mxu0
        %1064 = vrot.lane.b32.xlu0 %v1058, 8
        %v1065 = vpop.permute.xlu0 %1064
        %vm1067 = vcmask 130112
        %1068 = vst.msk [vmem:[#allocation2] sm:$0xff] %vm1067, %v1065
        %1069 = vrot.lane.b32.xlu0 %v838, 112
        %v1070 = vpop.permute.xlu0 %1069
        %1071 = vrot.lane.b32.xlu0 %v838, 80
        %v1072 = vpop.permute.xlu0 %1071
        %v1074 = vsel %vm842, %v1070, 0
        %v1077 = vsel %vm842, %v1072, 0
        %1079 = vmatprep.subr.bf16.mxu0 0
        %1080 = vmatpush1.bf16.xpose.msra.mxu0 %v1077
        %1081 = vmatprep.subr.bf16.mxu0 0
        %1082 = vmatpush1.bf16.xpose.msra.mxu0 0
        %1083 = vmatprep.subr.bf16.mxu0 0
        %1084 = vmatpush1.bf16.xpose.msra.mxu0 0
        %1085 = vmatprep.subr.bf16.mxu0 0
        %1086 = vmatpush1.bf16.xpose.msra.mxu0 0
        %1087 = vmatprep.subr.bf16.mxu0 0
        %1088 = vmatpush1.bf16.xpose.msra.mxu0 0
        %1089 = vmatprep.subr.bf16.mxu0 0
        %1090 = vmatpush1.bf16.xpose.msra.mxu0 0
        %1091 = vmatprep.subr.bf16.mxu0 0
        %1092 = vmatpush1.bf16.xpose.msra.mxu0 0
        %1093 = vmatprep.subr.bf16.mxu0 0
        %1094 = vmatpush1.bf16.xpose.msra.mxu0 0
        %1095 = vmatprep.subr.bf16.mxu0 0
        %1096 = vmatpush1.bf16.xpose.msra.mxu0 0
        %1097 = vmatprep.subr.bf16.mxu0 0
        %1098 = vmatpush1.bf16.xpose.msra.mxu0 0
        %1099 = vmatprep.subr.bf16.mxu0 0
        %1100 = vmatpush1.bf16.xpose.msra.mxu0 0
        %1101 = vmatprep.subr.bf16.mxu0 0
        %1102 = vmatpush1.bf16.xpose.msra.mxu0 0
        %1103 = vmatprep.subr.bf16.mxu0 0
        %1104 = vmatpush1.bf16.xpose.msra.mxu0 0
        %1105 = vmatprep.subr.bf16.mxu0 0
        %1106 = vmatpush1.bf16.xpose.msra.mxu0 0
        %1107 = vmatprep.subr.bf16.mxu0 0
        %1108 = vmatpush1.bf16.xpose.msra.mxu0 0
        %1109 = vmatprep.subr.bf16.mxu0 0
        %1110 = vmatpush1.bf16.xpose.msra.mxu0 0
        %1111 = vmatprep.mubr.bf16.mxu0 0
        %1112 = vmatmul.mubr.bf16.gmra.mrb[0].mxu0 %v1074
        %v1113 = vpop.f32.mrb[0].mxu0
        %v1114 = vadd.f32 0.0, %v1113
        %v1115 = vpop.f32.mrb[0].mxu0
        %v1116 = vpop.f32.mrb[0].mxu0
        %v1117 = vpop.f32.mrb[0].mxu0
        %1118 = vdwg.mxu0
        %v1119 = vmul.f32 %v1114, 0.35355338
        %v1120 = vsel %vm842, %v1119, -inf
        %1121 = vmax.xlane.f32.xlu0 %v1120
        %v1122 = vpop.xlane.xlu0 %1121
        %v1123 = vsub.f32 %v1119, %v1122
        %v1124 = vmul.f32 %v1123, 1.442695
        %v1125 = vpow.pop %v1124
        %v1126 = vsel %vm842, %v1125, 0.0
        %1127 = vadd.xlane.f32.xlu0 %v1126
        %v1128 = vpop.xlane.xlu0 %1127
        %v1129 = vrcp.pop %v1128
        %v1130 = vmul.f32 %v1125, %v1129
        %v1131 = vpack.c.bf16 %v1130, %v1130
        %1132 = vrot.lane.b32.xlu0 %v838, 48
        %v1133 = vpop.permute.xlu0 %1132
        %v1135 = vsel %vm842, %v1131, 0
        %v1138 = vsel %vm907, %v1133, 0
        %1140 = vmatprep.subr.bf16.mxu0 0
        %1141 = vmatpush1.bf16.msra.mxu0 %v1138
        %1142 = vmatprep.subr.bf16.mxu0 0
        %1143 = vmatpush1.bf16.msra.mxu0 0
        %1144 = vmatprep.subr.bf16.mxu0 0
        %1145 = vmatpush1.bf16.msra.mxu0 0
        %1146 = vmatprep.subr.bf16.mxu0 0
        %1147 = vmatpush1.bf16.msra.mxu0 0
        %1148 = vmatprep.subr.bf16.mxu0 0
        %1149 = vmatpush1.bf16.msra.mxu0 0
        %1150 = vmatprep.subr.bf16.mxu0 0
        %1151 = vmatpush1.bf16.msra.mxu0 0
        %1152 = vmatprep.subr.bf16.mxu0 0
        %1153 = vmatpush1.bf16.msra.mxu0 0
        %1154 = vmatprep.subr.bf16.mxu0 0
        %1155 = vmatpush1.bf16.msra.mxu0 0
        %1156 = vmatprep.subr.bf16.mxu0 0
        %1157 = vmatpush1.bf16.msra.mxu0 0
        %1158 = vmatprep.subr.bf16.mxu0 0
        %1159 = vmatpush1.bf16.msra.mxu0 0
        %1160 = vmatprep.subr.bf16.mxu0 0
        %1161 = vmatpush1.bf16.msra.mxu0 0
        %1162 = vmatprep.subr.bf16.mxu0 0
        %1163 = vmatpush1.bf16.msra.mxu0 0
        %1164 = vmatprep.subr.bf16.mxu0 0
        %1165 = vmatpush1.bf16.msra.mxu0 0
        %1166 = vmatprep.subr.bf16.mxu0 0
        %1167 = vmatpush1.bf16.msra.mxu0 0
        %1168 = vmatprep.subr.bf16.mxu0 0
        %1169 = vmatpush1.bf16.msra.mxu0 0
        %1170 = vmatprep.subr.bf16.mxu0 0
        %1171 = vmatpush1.bf16.msra.mxu0 0
        %1172 = vmatprep.mubr.bf16.mxu0 0
        %1173 = vmatmul.mubr.bf16.gmra.mrb[0].mxu0 %v1135
        %v1174 = vpop.f32.mrb[0].mxu0
        %v1175 = vadd.f32 0.0, %v1174
        %v1176 = vpop.f32.mrb[0].mxu0
        %v1177 = vpop.f32.mrb[0].mxu0
        %v1178 = vpop.f32.mrb[0].mxu0
        %1179 = vdwg.mxu0
        %1181 = vrot.lane.b32.xlu0 %v1175, 16
        %v1182 = vpop.permute.xlu0 %1181
        %vm1184 = vcmask 195712
        %1185 = vst.msk [vmem:[#allocation2] sm:$0xff] %vm1184, %v1182
        %1186 = vrot.lane.b32.xlu0 %v838, 104
        %v1187 = vpop.permute.xlu0 %1186
        %1188 = vrot.lane.b32.xlu0 %v838, 72
        %v1189 = vpop.permute.xlu0 %1188
        %v1191 = vsel %vm842, %v1187, 0
        %v1194 = vsel %vm842, %v1189, 0
        %1196 = vmatprep.subr.bf16.mxu0 0
        %1197 = vmatpush1.bf16.xpose.msra.mxu0 %v1194
        %1198 = vmatprep.subr.bf16.mxu0 0
        %1199 = vmatpush1.bf16.xpose.msra.mxu0 0
        %1200 = vmatprep.subr.bf16.mxu0 0
        %1201 = vmatpush1.bf16.xpose.msra.mxu0 0
        %1202 = vmatprep.subr.bf16.mxu0 0
        %1203 = vmatpush1.bf16.xpose.msra.mxu0 0
        %1204 = vmatprep.subr.bf16.mxu0 0
        %1205 = vmatpush1.bf16.xpose.msra.mxu0 0
        %1206 = vmatprep.subr.bf16.mxu0 0
        %1207 = vmatpush1.bf16.xpose.msra.mxu0 0
        %1208 = vmatprep.subr.bf16.mxu0 0
        %1209 = vmatpush1.bf16.xpose.msra.mxu0 0
        %1210 = vmatprep.subr.bf16.mxu0 0
        %1211 = vmatpush1.bf16.xpose.msra.mxu0 0
        %1212 = vmatprep.subr.bf16.mxu0 0
        %1213 = vmatpush1.bf16.xpose.msra.mxu0 0
        %1214 = vmatprep.subr.bf16.mxu0 0
        %1215 = vmatpush1.bf16.xpose.msra.mxu0 0
        %1216 = vmatprep.subr.bf16.mxu0 0
        %1217 = vmatpush1.bf16.xpose.msra.mxu0 0
        %1218 = vmatprep.subr.bf16.mxu0 0
        %1219 = vmatpush1.bf16.xpose.msra.mxu0 0
        %1220 = vmatprep.subr.bf16.mxu0 0
        %1221 = vmatpush1.bf16.xpose.msra.mxu0 0
        %1222 = vmatprep.subr.bf16.mxu0 0
        %1223 = vmatpush1.bf16.xpose.msra.mxu0 0
        %1224 = vmatprep.subr.bf16.mxu0 0
        %1225 = vmatpush1.bf16.xpose.msra.mxu0 0
        %1226 = vmatprep.subr.bf16.mxu0 0
        %1227 = vmatpush1.bf16.xpose.msra.mxu0 0
        %1228 = vmatprep.mubr.bf16.mxu0 0
        %1229 = vmatmul.mubr.bf16.gmra.mrb[0].mxu0 %v1191
        %v1230 = vpop.f32.mrb[0].mxu0
        %v1231 = vadd.f32 0.0, %v1230
        %v1232 = vpop.f32.mrb[0].mxu0
        %v1233 = vpop.f32.mrb[0].mxu0
        %v1234 = vpop.f32.mrb[0].mxu0
        %1235 = vdwg.mxu0
        %v1236 = vmul.f32 %v1231, 0.35355338
        %v1237 = vsel %vm842, %v1236, -inf
        %1238 = vmax.xlane.f32.xlu0 %v1237
        %v1239 = vpop.xlane.xlu0 %1238
        %v1240 = vsub.f32 %v1236, %v1239
        %v1241 = vmul.f32 %v1240, 1.442695
        %v1242 = vpow.pop %v1241
        %v1243 = vsel %vm842, %v1242, 0.0
        %1244 = vadd.xlane.f32.xlu0 %v1243
        %v1245 = vpop.xlane.xlu0 %1244
        %v1246 = vrcp.pop %v1245
        %v1247 = vmul.f32 %v1242, %v1246
        %v1248 = vpack.c.bf16 %v1247, %v1247
        %1249 = vrot.lane.b32.xlu0 %v838, 40
        %v1250 = vpop.permute.xlu0 %1249
        %v1252 = vsel %vm842, %v1248, 0
        %v1255 = vsel %vm907, %v1250, 0
        %1257 = vmatprep.subr.bf16.mxu0 0
        %1258 = vmatpush1.bf16.msra.mxu0 %v1255
        %1259 = vmatprep.subr.bf16.mxu0 0
        %1260 = vmatpush1.bf16.msra.mxu0 0
        %1261 = vmatprep.subr.bf16.mxu0 0
        %1262 = vmatpush1.bf16.msra.mxu0 0
        %1263 = vmatprep.subr.bf16.mxu0 0
        %1264 = vmatpush1.bf16.msra.mxu0 0
        %1265 = vmatprep.subr.bf16.mxu0 0
        %1266 = vmatpush1.bf16.msra.mxu0 0
        %1267 = vmatprep.subr.bf16.mxu0 0
        %1268 = vmatpush1.bf16.msra.mxu0 0
        %1269 = vmatprep.subr.bf16.mxu0 0
        %1270 = vmatpush1.bf16.msra.mxu0 0
        %1271 = vmatprep.subr.bf16.mxu0 0
        %1272 = vmatpush1.bf16.msra.mxu0 0
        %1273 = vmatprep.subr.bf16.mxu0 0
        %1274 = vmatpush1.bf16.msra.mxu0 0
        %1275 = vmatprep.subr.bf16.mxu0 0
        %1276 = vmatpush1.bf16.msra.mxu0 0
        %1277 = vmatprep.subr.bf16.mxu0 0
        %1278 = vmatpush1.bf16.msra.mxu0 0
        %1279 = vmatprep.subr.bf16.mxu0 0
        %1280 = vmatpush1.bf16.msra.mxu0 0
        %1281 = vmatprep.subr.bf16.mxu0 0
        %1282 = vmatpush1.bf16.msra.mxu0 0
        %1283 = vmatprep.subr.bf16.mxu0 0
        %1284 = vmatpush1.bf16.msra.mxu0 0
        %1285 = vmatprep.subr.bf16.mxu0 0
        %1286 = vmatpush1.bf16.msra.mxu0 0
        %1287 = vmatprep.subr.bf16.mxu0 0
        %1288 = vmatpush1.bf16.msra.mxu0 0
        %1289 = vmatprep.mubr.bf16.mxu0 0
        %1290 = vmatmul.mubr.bf16.gmra.mrb[0].mxu0 %v1252
        %v1291 = vpop.f32.mrb[0].mxu0
        %v1292 = vadd.f32 0.0, %v1291
        %v1293 = vpop.f32.mrb[0].mxu0
        %v1294 = vpop.f32.mrb[0].mxu0
        %v1295 = vpop.f32.mrb[0].mxu0
        %1296 = vdwg.mxu0
        %1298 = vrot.lane.b32.xlu0 %v1292, 24
        %v1299 = vpop.permute.xlu0 %1298
        %vm1301 = vcmask 261312
        %1302 = vst.msk [vmem:[#allocation2] sm:$0xff] %vm1301, %v1299
        %v1303 = vld [vmem:[#allocation2] sm:$0xff]
        %v1304 = vld [vmem:[%s695] sm:$0xf]
        %v1305 = vld [vmem:[%s695 + $0x4] sm:$0xf]
        %v1306 = vld [vmem:[%s695 + $0x8] sm:$0xf]
        %v1307 = vld [vmem:[%s695 + $0xc] sm:$0xf]
        %v1308 = vpack.c.bf16 %v1303, %v1303
        %v1313 = vunpack.c.l.b16 %v1304
        %v1314 = vunpack.c.l.b16 %v1305
        %v1315 = vunpack.c.l.b16 %v1306
        %v1316 = vunpack.c.l.b16 %v1307
        %v1317 = vpack.c.b16 %v1314, %v1313
        %v1318 = vpack.c.b16 %v1316, %v1315
        %v1322 = vsel %vm735, %v1308, 0
        %1324 = vmatprep.subr.bf16.mxu0 0
        %1325 = vmatpush1.bf16.msra.mxu0 %v1317
        %1326 = vmatprep.subr.bf16.mxu0 0
        %1327 = vmatpush1.bf16.msra.mxu0 %v1318
        %1328 = vmatprep.subr.bf16.mxu0 0
        %1329 = vmatpush1.bf16.msra.mxu0 0
        %1330 = vmatprep.subr.bf16.mxu0 0
        %1331 = vmatpush1.bf16.msra.mxu0 0
        %1332 = vmatprep.subr.bf16.mxu0 0
        %1333 = vmatpush1.bf16.msra.mxu0 0
        %1334 = vmatprep.subr.bf16.mxu0 0
        %1335 = vmatpush1.bf16.msra.mxu0 0
        %1336 = vmatprep.subr.bf16.mxu0 0
        %1337 = vmatpush1.bf16.msra.mxu0 0
        %1338 = vmatprep.subr.bf16.mxu0 0
        %1339 = vmatpush1.bf16.msra.mxu0 0
        %1340 = vmatprep.subr.bf16.mxu0 0
        %1341 = vmatpush1.bf16.msra.mxu0 0
        %1342 = vmatprep.subr.bf16.mxu0 0
        %1343 = vmatpush1.bf16.msra.mxu0 0
        %1344 = vmatprep.subr.bf16.mxu0 0
        %1345 = vmatpush1.bf16.msra.mxu0 0
        %1346 = vmatprep.subr.bf16.mxu0 0
        %1347 = vmatpush1.bf16.msra.mxu0 0
        %1348 = vmatprep.subr.bf16.mxu0 0
        %1349 = vmatpush1.bf16.msra.mxu0 0
        %1350 = vmatprep.subr.bf16.mxu0 0
        %1351 = vmatpush1.bf16.msra.mxu0 0
        %1352 = vmatprep.subr.bf16.mxu0 0
        %1353 = vmatpush1.bf16.msra.mxu0 0
        %1354 = vmatprep.subr.bf16.mxu0 0
        %1355 = vmatpush1.bf16.msra.mxu0 0
        %1356 = vmatprep.mubr.bf16.mxu0 0
        %1357 = vmatmul.mubr.bf16.gmra.mrb[0].mxu0 %v1322
        %v1358 = vpop.f32.mrb[0].mxu0
        %v1359 = vadd.f32 0.0, %v1358
        %v1360 = vpop.f32.mrb[0].mxu0
        %v1361 = vpop.f32.mrb[0].mxu0
        %v1362 = vpop.f32.mrb[0].mxu0
        %1363 = vdwg.mxu0
        %v1364 = vadd.f32 %v732, %v1359
        %v1365 = vld [vmem:[%s698] sm:$0x1]
        %v1367 = vlaneseq
        %v1368 = vshrl.u32 %v1367, 7
        %v1369 = vsub.s32 0, %v1368
        %v1370 = vrot.slane %v1365, %v1369
        %v1372 = vadd.f32 %v1364, %v1370
        %v1373 = vld [vmem:[%s701] sm:$0x1]
        %v1374 = vld [vmem:[%s704] sm:$0x1]
        %v1375 = vsel %vm735, %v1372, 0.0
        %1376 = vadd.xlane.f32.xlu0 %v1375
        %v1377 = vpop.xlane.xlu0 %1376
        %v1378 = vmul.f32 %v1377, %v739
        %v1379 = vsub.f32 %v1372, %v1378
        %v1380 = vmul.f32 %v1379, %v1379
        %v1381 = vsel %vm735, %v1380, 0.0
        %1382 = vadd.xlane.f32.xlu0 %v1381
        %v1383 = vpop.xlane.xlu0 %1382
        %v1384 = vmul.f32 %v1383, 0.032258064
        %v1385 = vrsqrt.pop %v1384
        %v1386 = vmul.f32 %v1384, %v1385
        %vm1387 = vcmp.eq.f32.partialorder %v1384, inf
        %v1388 = vsel %vm1387, %v1384, %v1386
        %vm1389 = vcmp.eq.f32.partialorder %v1384, 0.0
        %v1390 = vand.u32 %v1384, 2147483648
        %v1391 = vsel %vm1389, %v1390, %v1388
        %v1392 = vadd.f32 %v1391, 1e-06
        %v1393 = vrcp.pop %v1392
        %v1395 = vlaneseq
        %v1396 = vshrl.u32 %v1395, 7
        %v1397 = vsub.s32 0, %v1396
        %v1398 = vrot.slane %v1373, %v1397
        %v1400 = vmul.f32 %v1398, %v1379
        %v1401 = vmul.f32 %v1400, %v1393
        %v1403 = vlaneseq
        %v1404 = vshrl.u32 %v1403, 7
        %v1405 = vsub.s32 0, %v1404
        %v1406 = vrot.slane %v1374, %v1405
        %v1408 = vadd.f32 %v1401, %v1406
        %v1409 = vld [vmem:[%s709] sm:$0xf]
        %v1410 = vld [vmem:[%s709 + $0x4] sm:$0xf]
        %v1411 = vld [vmem:[%s709 + $0x8] sm:$0xf]
        %v1412 = vld [vmem:[%s709 + $0xc] sm:$0xf]
        %v1413 = vpack.c.bf16 %v1408, %v1408
        %v1414 = vld [vmem:[%s712] sm:$0x1]
        %v1416 = vlaneseq
        %v1417 = vshrl.u32 %v1416, 7
        %v1418 = vsub.s32 0, %v1417
        %v1419 = vrot.slane %v1414, %v1418
        %v1425 = vunpack.c.l.b16 %v1409
        %v1426 = vunpack.c.l.b16 %v1410
        %v1427 = vunpack.c.l.b16 %v1411
        %v1428 = vunpack.c.l.b16 %v1412
        %v1429 = vpack.c.b16 %v1426, %v1425
        %v1430 = vpack.c.b16 %v1428, %v1427
        %v1434 = vsel %vm735, %v1413, 0
        %1436 = vmatprep.subr.bf16.mxu0 0
        %1437 = vmatpush1.bf16.msra.mxu0 %v1429
        %1438 = vmatprep.subr.bf16.mxu0 0
        %1439 = vmatpush1.bf16.msra.mxu0 %v1430
        %1440 = vmatprep.subr.bf16.mxu0 0
        %1441 = vmatpush1.bf16.msra.mxu0 0
        %1442 = vmatprep.subr.bf16.mxu0 0
        %1443 = vmatpush1.bf16.msra.mxu0 0
        %1444 = vmatprep.subr.bf16.mxu0 0
        %1445 = vmatpush1.bf16.msra.mxu0 0
        %1446 = vmatprep.subr.bf16.mxu0 0
        %1447 = vmatpush1.bf16.msra.mxu0 0
        %1448 = vmatprep.subr.bf16.mxu0 0
        %1449 = vmatpush1.bf16.msra.mxu0 0
        %1450 = vmatprep.subr.bf16.mxu0 0
        %1451 = vmatpush1.bf16.msra.mxu0 0
        %1452 = vmatprep.subr.bf16.mxu0 0
        %1453 = vmatpush1.bf16.msra.mxu0 0
        %1454 = vmatprep.subr.bf16.mxu0 0
        %1455 = vmatpush1.bf16.msra.mxu0 0
        %1456 = vmatprep.subr.bf16.mxu0 0
        %1457 = vmatpush1.bf16.msra.mxu0 0
        %1458 = vmatprep.subr.bf16.mxu0 0
        %1459 = vmatpush1.bf16.msra.mxu0 0
        %1460 = vmatprep.subr.bf16.mxu0 0
        %1461 = vmatpush1.bf16.msra.mxu0 0
        %1462 = vmatprep.subr.bf16.mxu0 0
        %1463 = vmatpush1.bf16.msra.mxu0 0
        %1464 = vmatprep.subr.bf16.mxu0 0
        %1465 = vmatpush1.bf16.msra.mxu0 0
        %1466 = vmatprep.subr.bf16.mxu0 0
        %1467 = vmatpush1.bf16.msra.mxu0 0
        %1468 = vmatprep.mubr.bf16.mxu0 0
        %1469 = vmatmul.mubr.bf16.gmra.mrb[0].mxu0 %v1434
        %v1470 = vpop.f32.mrb[0].mxu0
        %v1471 = vadd.f32 %v1419, %v1470
        %v1472 = vpop.f32.mrb[0].mxu0
        %v1473 = vpop.f32.mrb[0].mxu0
        %v1474 = vpop.f32.mrb[0].mxu0
        %1475 = vdwg.mxu0
        %v1476 = vmax.f32 %v1471, 0.0
        %v1477 = vld [vmem:[%s717] sm:$0xf]
        %v1478 = vld [vmem:[%s717 + $0x4] sm:$0xf]
        %v1479 = vld [vmem:[%s717 + $0x8] sm:$0xf]
        %v1480 = vld [vmem:[%s717 + $0xc] sm:$0xf]
        %v1481 = vld [vmem:[%s717 + $0x10] sm:$0xf]
        %v1482 = vld [vmem:[%s717 + $0x14] sm:$0xf]
        %v1483 = vld [vmem:[%s717 + $0x18] sm:$0xf]
        %v1484 = vld [vmem:[%s717 + $0x1c] sm:$0xf]
        %v1485 = vpack.c.bf16 %v1476, %v1476
        %v1494 = vunpack.c.l.b16 %v1477
        %v1495 = vunpack.c.l.b16 %v1478
        %v1496 = vunpack.c.l.b16 %v1479
        %v1497 = vunpack.c.l.b16 %v1480
        %v1498 = vunpack.c.l.b16 %v1481
        %v1499 = vunpack.c.l.b16 %v1482
        %v1500 = vunpack.c.l.b16 %v1483
        %v1501 = vunpack.c.l.b16 %v1484
        %v1502 = vpack.c.b16 %v1495, %v1494
        %v1503 = vpack.c.b16 %v1497, %v1496
        %v1504 = vpack.c.b16 %v1499, %v1498
        %v1505 = vpack.c.b16 %v1501, %v1500
        %vm1510 = vcmask 523264
        %v1512 = vsel %vm1510, %v1485, 0
        %1514 = vmatprep.subr.bf16.mxu0 0
        %1515 = vmatpush1.bf16.msra.mxu0 %v1502
        %1516 = vmatprep.subr.bf16.mxu0 0
        %1517 = vmatpush1.bf16.msra.mxu0 %v1503
        %1518 = vmatprep.subr.bf16.mxu0 0
        %1519 = vmatpush1.bf16.msra.mxu0 %v1504
        %1520 = vmatprep.subr.bf16.mxu0 0
        %1521 = vmatpush1.bf16.msra.mxu0 %v1505
        %1522 = vmatprep.subr.bf16.mxu0 0
        %1523 = vmatpush1.bf16.msra.mxu0 0
        %1524 = vmatprep.subr.bf16.mxu0 0
        %1525 = vmatpush1.bf16.msra.mxu0 0
        %1526 = vmatprep.subr.bf16.mxu0 0
        %1527 = vmatpush1.bf16.msra.mxu0 0
        %1528 = vmatprep.subr.bf16.mxu0 0
        %1529 = vmatpush1.bf16.msra.mxu0 0
        %1530 = vmatprep.subr.bf16.mxu0 0
        %1531 = vmatpush1.bf16.msra.mxu0 0
        %1532 = vmatprep.subr.bf16.mxu0 0
        %1533 = vmatpush1.bf16.msra.mxu0 0
        %1534 = vmatprep.subr.bf16.mxu0 0
        %1535 = vmatpush1.bf16.msra.mxu0 0
        %1536 = vmatprep.subr.bf16.mxu0 0
        %1537 = vmatpush1.bf16.msra.mxu0 0
        %1538 = vmatprep.subr.bf16.mxu0 0
        %1539 = vmatpush1.bf16.msra.mxu0 0
        %1540 = vmatprep.subr.bf16.mxu0 0
        %1541 = vmatpush1.bf16.msra.mxu0 0
        %1542 = vmatprep.subr.bf16.mxu0 0
        %1543 = vmatpush1.bf16.msra.mxu0 0
        %1544 = vmatprep.subr.bf16.mxu0 0
        %1545 = vmatpush1.bf16.msra.mxu0 0
        %1546 = vmatprep.mubr.bf16.mxu0 0
        %1547 = vmatmul.mubr.bf16.gmra.mrb[0].mxu0 %v1512
        %v1548 = vpop.f32.mrb[0].mxu0
        %v1549 = vadd.f32 0.0, %v1548
        %v1550 = vpop.f32.mrb[0].mxu0
        %v1551 = vpop.f32.mrb[0].mxu0
        %v1552 = vpop.f32.mrb[0].mxu0
        %1553 = vdwg.mxu0
        %v1554 = vadd.f32 %v1372, %v1549
        %v1555 = vld [vmem:[%s720] sm:$0x1]
        %v1557 = vlaneseq
        %v1558 = vshrl.u32 %v1557, 7
        %v1559 = vsub.s32 0, %v1558
        %v1560 = vrot.slane %v1555, %v1559
        %v1562 = vadd.f32 %v1554, %v1560
        %1563 = vst.msk [vmem:[%s672] sm:$0xff] %vm735, %v1562
        %p1564 = scmp.eq.s32.totalorder %s35, 1
        // Predicated region
        $region89: #{_lambda_.1} parent=83 // pred_check
          %p1565 = pneg %p1564
        $region90: #{_lambda_.1} parent=83 // pred_check_branch
          %1567 = sbr.rel (%p1565) target = $region92
        $region91: #{_lambda_.1} parent=83 // pred_region
          %v1568 = vld [vmem:[%s14] sm:$0x1]
          %v1569 = vld [vmem:[%s15] sm:$0x1]
          %v1570 = vsel %vm735, %v1562, 0.0
          %1571 = vadd.xlane.f32.xlu0 %v1570
          %v1572 = vpop.xlane.xlu0 %1571
          %v1573 = vmul.f32 %v1572, %v739
          %v1574 = vsub.f32 %v1562, %v1573
          %v1575 = vmul.f32 %v1574, %v1574
          %v1576 = vsel %vm735, %v1575, 0.0
          %1577 = vadd.xlane.f32.xlu0 %v1576
          %v1578 = vpop.xlane.xlu0 %1577
          %v1579 = vmul.f32 %v1578, 0.032258064
          %v1580 = vrsqrt.pop %v1579
          %v1581 = vmul.f32 %v1579, %v1580
          %vm1582 = vcmp.eq.f32.partialorder %v1579, inf
          %v1583 = vsel %vm1582, %v1579, %v1581
          %vm1584 = vcmp.eq.f32.partialorder %v1579, 0.0
          %v1585 = vand.u32 %v1579, 2147483648
          %v1586 = vsel %vm1584, %v1585, %v1583
          %v1587 = vadd.f32 %v1586, 1e-06
          %v1588 = vrcp.pop %v1587
          %v1590 = vlaneseq
          %v1591 = vshrl.u32 %v1590, 7
          %v1592 = vsub.s32 0, %v1591
          %v1593 = vrot.slane %v1568, %v1592
          %v1595 = vmul.f32 %v1593, %v1574
          %v1596 = vmul.f32 %v1595, %v1588
          %v1598 = vlaneseq
          %v1599 = vshrl.u32 %v1598, 7
          %v1600 = vsub.s32 0, %v1599
          %v1601 = vrot.slane %v1569, %v1600
          %v1603 = vadd.f32 %v1596, %v1601
          %1604 = vst.msk [vmem:[%s672] sm:$0xff] %vm735, %v1603
        $region92: #{_lambda_.1} parent=83 // pred_fallthru
          _
        %s1605 = sand.u32 %s451, 1
        %s1606 = scalar_lea.sflag [#allocation4], %s1605
        %s1607 = sand.u32 %s451, 1
        %s1608 = smul.addr %s1607, 8
        %s1609 = scalar_lea.vmem [#allocation3], %s1608
        // Predicated region
        $region93: #{_lambda_.1} parent=83 // pred_check
          %p1610 = pneg %p461
        $region94: #{_lambda_.1} parent=83 // pred_check_branch
          %1612 = sbr.rel (%p1610) target = $region96
        $region95: #{_lambda_.1} parent=83 // pred_region
          %s1614 = ssub.s32 128, 128
          %1615 = vsyncadd %s1606, %s1614
          %s1616 = smul.addr %s34, 128
          %s1617 = scalar_lea.hbm %s16, %s1616
          %s1619 = sshll.u32 %s1609, 4
          %s1620 = int_to_ptr.vmem [resolvable:$true] %s1619
          %1622 = dma.vmem_to_hbm [thread:$0]  %s1620, 128, %s1617, %s1606
        $region96: #{_lambda_.1} parent=83 // pred_fallthru
          _
      $region84: #{_lambda_.1} parent=5 // pred_fallthru
        _
      %p1623 = scmp.le.s32.totalorder 2, %s25
      // Predicated region
      $region97: #{_lambda_.1} parent=5 // pred_check
        %p1624 = pneg %p1623
      $region98: #{_lambda_.1} parent=5 // pred_check_branch
        %1626 = sbr.rel (%p1624) target = $region100
      $region99: #{_lambda_.1} parent=5 // pred_region
        %s1627 = ssub.s32 %s25, 2
        // Predicated region
        $region101: #{_lambda_.1} parent=99 // pred_check
          %p1628 = pneg %p467
        $region102: #{_lambda_.1} parent=99 // pred_check_branch
          %1630 = sbr.rel (%p1628) target = $region104
        $region103: #{_lambda_.1} parent=99 // pred_region
          %s1631 = sand.u32 %s452, 1
          %s1632 = scalar_lea.sflag [#allocation4], %s1631
          %s1633 = sand.u32 %s452, 1
          %s1634 = smul.addr %s1633, 8
          %s1635 = scalar_lea.vmem [#allocation3], %s1634
          %1636 = dma.done %s1632, 128
        $region104: #{_lambda_.1} parent=99 // pred_fallthru
          _
      $region100: #{_lambda_.1} parent=5 // pred_fallthru
        _
    $region6: #{_lambda_.1} parent=1 // loop_footer
      %s29 = sadd.s32 1, %s25
    $region7: #{_lambda_.1} parent=1 // loop_footer_branch
      %24 = sbr.rel target = $region3
    $region8: #{_lambda_.1} parent=1 // loop_exit
      _
    %1637 = vsyncpa [#allocation4], 1
    %s1638 = scalar_lea.sflag [#allocation4], 1
    %1639 = vsyncpa %s1638, 1

</llo_original>
